<compile_context>
chip_gen: v6e
topology: v6e:2x2x1
jax: 0.10.0
libtpu: 0.0.40
codegen_flags: <defaults>
</compile_context>

<pallas_src>
import jax
import jax.numpy as jnp
from jax.experimental import pallas as pl
from jax.experimental.pallas import tpu as pltpu


def _round_up(x, m):
    return ((x + m - 1) // m) * m


# ---------------- fused multi-step decoder kernel ----------------

def make_decoder_kernel(num_layers, hidden_size, vocab_in, batch):
    H = hidden_size
    L = num_layers

    def kernel(*refs):
        # scalar prefetch (SMEM)
        tok_ref = refs[0]                               # (T, N) int32
        # inputs (VMEM, resident across the whole grid: constant index_maps)
        h0_ref, c0_ref, emb_ref = refs[1:4]             # (L,N,H), (L,N,H), (V_in,E)
        w_refs = refs[4:4 + 3 * L]                      # per layer: w_ih_t, w_hh_t, b
        fc_w_ref = refs[4 + 3 * L]                      # (H, Vp) bf16
        fc_b_ref = refs[5 + 3 * L]                      # (1, Vp) f32
        # outputs
        logits_ref, h_out_ref, c_out_ref = refs[6 + 3 * L:9 + 3 * L]
        # scratch (persists across grid steps)
        x_s, h_state, c_state = refs[9 + 3 * L:12 + 3 * L]

        t = pl.program_id(0)

        # ---- load initial recurrent state once ----
        @pl.when(t == 0)
        def _init():
            h_state[...] = h0_ref[...]
            c_state[...] = c0_ref[...]

        # ---- embedding: real row gather from the VMEM-resident table ----
        # token ids come from SMEM (scalar path); clamp to avoid OOB reads.
        for i in range(batch):
            idx = jnp.clip(tok_ref[t, i], 0, vocab_in - 1)
            x_s[pl.ds(i, 1), :] = emb_ref[pl.ds(idx, 1), :]

        layer_in = x_s[...]                             # (N, E) f32

        # ---- num_layers LSTM cells, statically unrolled ----
        for l in range(L):
            w_ih = w_refs[3 * l][...]                   # (D_in, 4H) bf16
            w_hh = w_refs[3 * l + 1][...]               # (H, 4H)    bf16
            b = w_refs[3 * l + 2][...]                  # (1, 4H)    f32 (b_ih+b_hh)
            h_prev = h_state[l]                         # (N, H) f32
            c_prev = c_state[l]                         # (N, H) f32

            gates = (jnp.dot(layer_in.astype(w_ih.dtype), w_ih,
                             preferred_element_type=jnp.float32)
                     + jnp.dot(h_prev.astype(w_hh.dtype), w_hh,
                               preferred_element_type=jnp.float32)
                     + b)                               # (N, 4H) f32

            # Two full-vreg transcendental passes (EUP), then static lane
            # slices.  PyTorch gate order: i, f, g, o.  Keep f32 (v5e note).
            sig = jax.nn.sigmoid(gates)
            tnh = jnp.tanh(gates)
            i_g = sig[:, 0 * H:1 * H]
            f_g = sig[:, 1 * H:2 * H]
            g_g = tnh[:, 2 * H:3 * H]
            o_g = sig[:, 3 * H:4 * H]

            c_new = f_g * c_prev + i_g * g_g            # f32 cell state
            h_new = o_g * jnp.tanh(c_new)

            h_state[l] = h_new
            c_state[l] = c_new
            layer_in = h_new                            # feed next layer

        # ---- fc head, lane-dense (vocab padded to multiple of 128) ----
        logits_ref[0] = (jnp.dot(layer_in.astype(fc_w_ref.dtype), fc_w_ref[...],
                                 preferred_element_type=jnp.float32)
                         + fc_b_ref[...])

        # ---- write final recurrent state back once ----
        @pl.when(t == pl.num_programs(0) - 1)
        def _finalize():
            h_out_ref[...] = h_state[...]
            c_out_ref[...] = c_state[...]

    return kernel


# ---------------- wrappers ----------------

def _decode_impl(tokens, hidden, cell, params, vocab_size):
    """Teacher-forced decode of T steps in one pallas_call.

    tokens: (T, N) int32.  Returns (logits (T,N,vocab), hidden', cell')."""
    T, N = tokens.shape
    L, _, H = hidden.shape
    V_in, E = params["embedding"].shape
    Vp = params["fc_w_t"].shape[-1]

    const2 = lambda t, tok: (0, 0)
    const3 = lambda t, tok: (0, 0, 0)

    inputs = [hidden, cell, params["embedding"]]
    in_specs = [
        pl.BlockSpec((L, N, H), const3),
        pl.BlockSpec((L, N, H), const3),
        pl.BlockSpec((V_in, E), const2),
    ]
    for l in range(L):
        w_ih, w_hh, b = params["w_ih_t"][l], params["w_hh_t"][l], params["b"][l]
        inputs += [w_ih, w_hh, b]
        in_specs += [pl.BlockSpec(w_ih.shape, const2),
                     pl.BlockSpec(w_hh.shape, const2),
                     pl.BlockSpec(b.shape, const2)]
    inputs += [params["fc_w_t"], params["fc_b"]]
    in_specs += [pl.BlockSpec(params["fc_w_t"].shape, const2),
                 pl.BlockSpec(params["fc_b"].shape, const2)]

    out_shape = (jax.ShapeDtypeStruct((T, N, Vp), jnp.float32),
                 jax.ShapeDtypeStruct((L, N, H), jnp.float32),
                 jax.ShapeDtypeStruct((L, N, H), jnp.float32))
    out_specs = (pl.BlockSpec((1, N, Vp), lambda t, tok: (t, 0, 0)),
                 pl.BlockSpec((L, N, H), const3),
                 pl.BlockSpec((L, N, H), const3))

    grid_spec = pltpu.PrefetchScalarGridSpec(
        num_scalar_prefetch=1,
        grid=(T,),
        in_specs=in_specs,
        out_specs=out_specs,
        scratch_shapes=[pltpu.VMEM((N, E), jnp.float32),   # gathered embeddings
                        pltpu.VMEM((L, N, H), jnp.float32),  # hidden state carry
                        pltpu.VMEM((L, N, H), jnp.float32)],  # cell state carry
    )

    logits_pad, h_new, c_new = pl.pallas_call(
        make_decoder_kernel(L, H, V_in, N),
        grid_spec=grid_spec,
        out_shape=out_shape,
        compiler_params=pltpu.CompilerParams(
            # T axis is sequential (state carried step to step).
            dimension_semantics=("arbitrary",)),
    )(tokens.astype(jnp.int32), *inputs)

    return logits_pad[..., :vocab_size], h_new, c_new


decoder_decode = jax.jit(_decode_impl, static_argnums=(4,))


def decoder_forward(x_tokens, hidden, cell, params, vocab_size):
    """Single decoder step — mirrors Decoder.forward(x, hidden, cell)."""
    logits, h_new, c_new = decoder_decode(x_tokens[None, :], hidden, cell,
                                          params, vocab_size)
    return logits[0], h_new, c_new


def decoder_reference(tokens, hidden, cell, params, vocab_size):
    """Pure-JAX reference with identical dtype policy (correctness check)."""
    T, N = tokens.shape
    L, _, H = hidden.shape
    h = [hidden[l] for l in range(L)]
    c = [cell[l] for l in range(L)]
    logits_all = []
    for t in range(T):
        layer_in = params["embedding"][tokens[t]]          # (N, E) f32
        for l in range(L):
            w_ih, w_hh, b = params["w_ih_t"][l], params["w_hh_t"][l], params["b"][l]
            gates = (jnp.dot(layer_in.astype(w_ih.dtype), w_ih,
                             preferred_element_type=jnp.float32)
                     + jnp.dot(h[l].astype(w_hh.dtype), w_hh,
                               preferred_element_type=jnp.float32)
                     + b)
            i_g = jax.nn.sigmoid(gates[:, 0 * H:1 * H])
            f_g = jax.nn.sigmoid(gates[:, 1 * H:2 * H])
            g_g = jnp.tanh(gates[:, 2 * H:3 * H])
            o_g = jax.nn.sigmoid(gates[:, 3 * H:4 * H])
            c[l] = f_g * c[l] + i_g * g_g
            h[l] = o_g * jnp.tanh(c[l])
            layer_in = h[l]
        logit = (jnp.dot(layer_in.astype(params["fc_w_t"].dtype), params["fc_w_t"],
                         preferred_element_type=jnp.float32)
                 + params["fc_b"])[:, :vocab_size]
        logits_all.append(logit)
    return jnp.stack(logits_all), jnp.stack(h), jnp.stack(c)


def init_params(key, input_size, embedding_size, hidden_size, num_layers, vocab_size):
    ks = jax.random.split(key, 3 + 4 * num_layers)
    scale = 0.02
    embedding = scale * jax.random.normal(ks[0], (input_size, embedding_size),
                                          jnp.float32)

    w_ih_t, w_hh_t, b = [], [], []
    for l in range(num_layers):
        d_in = embedding_size if l == 0 else hidden_size
        k0, k1, k2, k3 = ks[1 + 4 * l: 5 + 4 * l]
        w_ih = scale * jax.random.normal(k0, (4 * hidden_size, d_in), jnp.float32)
        w_hh = scale * jax.random.normal(k1, (4 * hidden_size, hidden_size), jnp.float32)
        b_ih = scale * jax.random.normal(k2, (4 * hidden_size,), jnp.float32)
        b_hh = scale * jax.random.normal(k3, (4 * hidden_size,), jnp.float32)
        w_ih_t.append(w_ih.T.astype(jnp.bfloat16))           # (d_in, 4H) bf16
        w_hh_t.append(w_hh.T.astype(jnp.bfloat16))           # (H, 4H)   bf16
        b.append((b_ih + b_hh)[None, :])                      # (1, 4H)   f32

    k_fcw, k_fcb = ks[-2], ks[-1]
    fc_w = scale * jax.random.normal(k_fcw, (vocab_size, hidden_size), jnp.float32)
    fc_b = scale * jax.random.normal(k_fcb, (vocab_size,), jnp.float32)

    v_pad = max(128, _round_up(vocab_size, 128))              # lane-dense fc output
    fc_w_t = jnp.zeros((hidden_size, v_pad), jnp.float32)
    fc_w_t = fc_w_t.at[:, :vocab_size].set(fc_w.T).astype(jnp.bfloat16)
    fc_b_p = jnp.zeros((1, v_pad), jnp.float32).at[:, :vocab_size].set(fc_b[None, :])

    return {
        "embedding": embedding,                               # (V_in, E) f32 (gather)
        "w_ih_t": w_ih_t,
        "w_hh_t": w_hh_t,
        "b": b,
        "fc_w_t": fc_w_t,                                     # (H, Vpad) bf16
        "fc_b": fc_b_p,                                       # (1, Vpad) f32
    }


if __name__ == "__main__":
    INPUT_SIZE = 64    # embedding rows (decoder vocab)
    EMBED = 32
    HIDDEN = 32
    NUM_LAYERS = 2
    VOCAB = 64
    N = 8              # batch
    T = 6              # decode steps fused into one pallas_call

    key = jax.random.PRNGKey(0)
    k_par, k_tok, k_h, k_c = jax.random.split(key, 4)

    params = init_params(k_par, INPUT_SIZE, EMBED, HIDDEN, NUM_LAYERS, VOCAB)

    tokens = jax.random.randint(k_tok, (T, N), 0, INPUT_SIZE, dtype=jnp.int32)
    hidden = jax.random.normal(k_h, (NUM_LAYERS, N, HIDDEN), jnp.float32)
    cell = jax.random.normal(k_c, (NUM_LAYERS, N, HIDDEN), jnp.float32)

    # References (multi-step and single-step).
    ref_logits, ref_h, ref_c = decoder_reference(tokens, hidden, cell, params, VOCAB)
    ref1_logits, ref1_h, ref1_c = decoder_reference(tokens[:1], hidden, cell,
                                                    params, VOCAB)

    # Fused multi-step decode (weights resident in VMEM across all T steps).
    logits, h_new, c_new = decoder_decode(tokens, hidden, cell, params, VOCAB)
    jax.block_until_ready((logits, h_new, c_new))

    # Single-step call == the original module's forward().
    pred1, h1, c1 = decoder_forward(tokens[0], hidden, cell, params, VOCAB)
    jax.block_until_ready((pred1, h1, c1))

    assert logits.shape == (T, N, VOCAB)
    assert h_new.shape == (NUM_LAYERS, N, HIDDEN)
    assert c_new.shape == (NUM_LAYERS, N, HIDDEN)
    assert pred1.shape == (N, VOCAB)

    assert bool(jnp.allclose(logits, ref_logits, atol=5e-3, rtol=5e-2))
    assert bool(jnp.allclose(h_new, ref_h, atol=5e-3, rtol=5e-2))
    assert bool(jnp.allclose(c_new, ref_c, atol=5e-3, rtol=5e-2))
    assert bool(jnp.allclose(pred1, ref1_logits[0], atol=5e-3, rtol=5e-2))
    assert bool(jnp.allclose(h1, ref1_h, atol=5e-3, rtol=5e-2))
    assert bool(jnp.allclose(c1, ref1_c, atol=5e-3, rtol=5e-2))
    print("KERNEL_OK")
</pallas_src>

<mosaic_0001>
module attributes {stable_mosaic.version = 11 : i64} {
  func.func @kernel(%arg0: i32, %arg1: memref<6x8xi32, #tpu.memory_space<smem>>, %arg2: memref<2x8x32xf32, #tpu.memory_space<vmem>>, %arg3: memref<2x8x32xf32, #tpu.memory_space<vmem>>, %arg4: memref<64x32xf32, #tpu.memory_space<vmem>>, %arg5: memref<32x128xbf16, #tpu.memory_space<vmem>>, %arg6: memref<32x128xbf16, #tpu.memory_space<vmem>>, %arg7: memref<1x128xf32, #tpu.memory_space<vmem>>, %arg8: memref<32x128xbf16, #tpu.memory_space<vmem>>, %arg9: memref<32x128xbf16, #tpu.memory_space<vmem>>, %arg10: memref<1x128xf32, #tpu.memory_space<vmem>>, %arg11: memref<32x128xbf16, #tpu.memory_space<vmem>>, %arg12: memref<1x128xf32, #tpu.memory_space<vmem>>, %arg13: memref<1x8x128xf32, #tpu.memory_space<vmem>>, %arg14: memref<2x8x32xf32, #tpu.memory_space<vmem>>, %arg15: memref<2x8x32xf32, #tpu.memory_space<vmem>>, %arg16: memref<8x32xf32, #tpu.memory_space<vmem>>, %arg17: memref<2x8x32xf32, #tpu.memory_space<vmem>>, %arg18: memref<2x8x32xf32, #tpu.memory_space<vmem>>) attributes {dimension_semantics = [#tpu.dimension_semantics<arbitrary>], iteration_bounds = array<i64: 6>, scalar_prefetch = 1 : i64, scratch_operands = 3 : i64, tpu.core_type = #tpu.core_type<tc>, window_params = [{pipeline_mode = #tpu.pipeline_mode<synchronous>, transform_indices = @transform_0, window_bounds = array<i64: 2, 8, 32>}, {pipeline_mode = #tpu.pipeline_mode<synchronous>, transform_indices = @transform_1, window_bounds = array<i64: 2, 8, 32>}, {pipeline_mode = #tpu.pipeline_mode<synchronous>, transform_indices = @transform_2, window_bounds = array<i64: 64, 32>}, {pipeline_mode = #tpu.pipeline_mode<synchronous>, transform_indices = @transform_3, window_bounds = array<i64: 32, 128>}, {pipeline_mode = #tpu.pipeline_mode<synchronous>, transform_indices = @transform_4, window_bounds = array<i64: 32, 128>}, {pipeline_mode = #tpu.pipeline_mode<synchronous>, transform_indices = @transform_5, window_bounds = array<i64: 1, 128>}, {pipeline_mode = #tpu.pipeline_mode<synchronous>, transform_indices = @transform_6, window_bounds = array<i64: 32, 128>}, {pipeline_mode = #tpu.pipeline_mode<synchronous>, transform_indices = @transform_7, window_bounds = array<i64: 32, 128>}, {pipeline_mode = #tpu.pipeline_mode<synchronous>, transform_indices = @transform_8, window_bounds = array<i64: 1, 128>}, {pipeline_mode = #tpu.pipeline_mode<synchronous>, transform_indices = @transform_9, window_bounds = array<i64: 32, 128>}, {pipeline_mode = #tpu.pipeline_mode<synchronous>, transform_indices = @transform_10, window_bounds = array<i64: 1, 128>}, {transform_indices = @transform_11, window_bounds = array<i64: 1, 8, 128>}, {pipeline_mode = #tpu.pipeline_mode<synchronous>, transform_indices = @transform_12, window_bounds = array<i64: 2, 8, 32>}, {pipeline_mode = #tpu.pipeline_mode<synchronous>, transform_indices = @transform_13, window_bounds = array<i64: 2, 8, 32>}]} {
    %c0_i32 = arith.constant 0 : i32
    %0 = arith.cmpi eq, %arg0, %c0_i32 : i32
    %1 = arith.extui %0 : i1 to i32
    %c0_i32_0 = arith.constant 0 : i32
    %2 = arith.cmpi ne, %1, %c0_i32_0 : i32
    scf.if %2 {
      %c0_92 = arith.constant 0 : index
      %c0_93 = arith.constant 0 : index
      %c0_94 = arith.constant 0 : index
      %142 = vector.load %arg2[%c0_92, %c0_93, %c0_94] : memref<2x8x32xf32, #tpu.memory_space<vmem>>, vector<2x8x32xf32>
      %c0_95 = arith.constant 0 : index
      %c0_96 = arith.constant 0 : index
      %c0_97 = arith.constant 0 : index
      %143 = vector.load %arg17[%c0_95, %c0_96, %c0_97] : memref<2x8x32xf32, #tpu.memory_space<vmem>>, vector<2x8x32xf32>
      tpu.vector_store %arg17[%c0_95, %c0_96, %c0_97], %142 {strides = array<i32>} : memref<2x8x32xf32, #tpu.memory_space<vmem>>, vector<2x8x32xf32>,
      %c0_98 = arith.constant 0 : index
      %c0_99 = arith.constant 0 : index
      %c0_100 = arith.constant 0 : index
      %144 = vector.load %arg3[%c0_98, %c0_99, %c0_100] : memref<2x8x32xf32, #tpu.memory_space<vmem>>, vector<2x8x32xf32>
      %c0_101 = arith.constant 0 : index
      %c0_102 = arith.constant 0 : index
      %c0_103 = arith.constant 0 : index
      %145 = vector.load %arg18[%c0_101, %c0_102, %c0_103] : memref<2x8x32xf32, #tpu.memory_space<vmem>>, vector<2x8x32xf32>
      tpu.vector_store %arg18[%c0_101, %c0_102, %c0_103], %144 {strides = array<i32>} : memref<2x8x32xf32, #tpu.memory_space<vmem>>, vector<2x8x32xf32>,
    } else {
    }
    %3 = arith.index_cast %arg0 : i32 to index
    %c0 = arith.constant 0 : index
    %4 = memref.load %arg1[%3, %c0] : memref<6x8xi32, #tpu.memory_space<smem>>
    %c0_i32_1 = arith.constant 0 : i32
    %c63_i32 = arith.constant 63 : i32
    %5 = arith.maxsi %c0_i32_1, %4 : i32
    %6 = arith.minsi %c63_i32, %5 : i32
    %7 = arith.index_cast %6 : i32 to index
    %c0_2 = arith.constant 0 : index
    %8 = vector.load %arg4[%7, %c0_2] : memref<64x32xf32, #tpu.memory_space<vmem>>, vector<1x32xf32>
    %c0_3 = arith.constant 0 : index
    %c0_4 = arith.constant 0 : index
    %9 = vector.load %arg16[%c0_3, %c0_4] : memref<8x32xf32, #tpu.memory_space<vmem>>, vector<1x32xf32>
    tpu.vector_store %arg16[%c0_3, %c0_4], %8 {strides = array<i32>} : memref<8x32xf32, #tpu.memory_space<vmem>>, vector<1x32xf32>,
    %10 = arith.index_cast %arg0 : i32 to index
    %c1 = arith.constant 1 : index
    %11 = memref.load %arg1[%10, %c1] : memref<6x8xi32, #tpu.memory_space<smem>>
    %c0_i32_5 = arith.constant 0 : i32
    %c63_i32_6 = arith.constant 63 : i32
    %12 = arith.maxsi %c0_i32_5, %11 : i32
    %13 = arith.minsi %c63_i32_6, %12 : i32
    %14 = arith.index_cast %13 : i32 to index
    %c0_7 = arith.constant 0 : index
    %15 = vector.load %arg4[%14, %c0_7] : memref<64x32xf32, #tpu.memory_space<vmem>>, vector<1x32xf32>
    %c1_8 = arith.constant 1 : index
    %c0_9 = arith.constant 0 : index
    %16 = vector.load %arg16[%c1_8, %c0_9] : memref<8x32xf32, #tpu.memory_space<vmem>>, vector<1x32xf32>
    tpu.vector_store %arg16[%c1_8, %c0_9], %15 {strides = array<i32>} : memref<8x32xf32, #tpu.memory_space<vmem>>, vector<1x32xf32>,
    %17 = arith.index_cast %arg0 : i32 to index
    %c2 = arith.constant 2 : index
    %18 = memref.load %arg1[%17, %c2] : memref<6x8xi32, #tpu.memory_space<smem>>
    %c0_i32_10 = arith.constant 0 : i32
    %c63_i32_11 = arith.constant 63 : i32
    %19 = arith.maxsi %c0_i32_10, %18 : i32
    %20 = arith.minsi %c63_i32_11, %19 : i32
    %21 = arith.index_cast %20 : i32 to index
    %c0_12 = arith.constant 0 : index
    %22 = vector.load %arg4[%21, %c0_12] : memref<64x32xf32, #tpu.memory_space<vmem>>, vector<1x32xf32>
    %c2_13 = arith.constant 2 : index
    %c0_14 = arith.constant 0 : index
    %23 = vector.load %arg16[%c2_13, %c0_14] : memref<8x32xf32, #tpu.memory_space<vmem>>, vector<1x32xf32>
    tpu.vector_store %arg16[%c2_13, %c0_14], %22 {strides = array<i32>} : memref<8x32xf32, #tpu.memory_space<vmem>>, vector<1x32xf32>,
    %24 = arith.index_cast %arg0 : i32 to index
    %c3 = arith.constant 3 : index
    %25 = memref.load %arg1[%24, %c3] : memref<6x8xi32, #tpu.memory_space<smem>>
    %c0_i32_15 = arith.constant 0 : i32
    %c63_i32_16 = arith.constant 63 : i32
    %26 = arith.maxsi %c0_i32_15, %25 : i32
    %27 = arith.minsi %c63_i32_16, %26 : i32
    %28 = arith.index_cast %27 : i32 to index
    %c0_17 = arith.constant 0 : index
    %29 = vector.load %arg4[%28, %c0_17] : memref<64x32xf32, #tpu.memory_space<vmem>>, vector<1x32xf32>
    %c3_18 = arith.constant 3 : index
    %c0_19 = arith.constant 0 : index
    %30 = vector.load %arg16[%c3_18, %c0_19] : memref<8x32xf32, #tpu.memory_space<vmem>>, vector<1x32xf32>
    tpu.vector_store %arg16[%c3_18, %c0_19], %29 {strides = array<i32>} : memref<8x32xf32, #tpu.memory_space<vmem>>, vector<1x32xf32>,
    %31 = arith.index_cast %arg0 : i32 to index
    %c4 = arith.constant 4 : index
    %32 = memref.load %arg1[%31, %c4] : memref<6x8xi32, #tpu.memory_space<smem>>
    %c0_i32_20 = arith.constant 0 : i32
    %c63_i32_21 = arith.constant 63 : i32
    %33 = arith.maxsi %c0_i32_20, %32 : i32
    %34 = arith.minsi %c63_i32_21, %33 : i32
    %35 = arith.index_cast %34 : i32 to index
    %c0_22 = arith.constant 0 : index
    %36 = vector.load %arg4[%35, %c0_22] : memref<64x32xf32, #tpu.memory_space<vmem>>, vector<1x32xf32>
    %c4_23 = arith.constant 4 : index
    %c0_24 = arith.constant 0 : index
    %37 = vector.load %arg16[%c4_23, %c0_24] : memref<8x32xf32, #tpu.memory_space<vmem>>, vector<1x32xf32>
    tpu.vector_store %arg16[%c4_23, %c0_24], %36 {strides = array<i32>} : memref<8x32xf32, #tpu.memory_space<vmem>>, vector<1x32xf32>,
    %38 = arith.index_cast %arg0 : i32 to index
    %c5 = arith.constant 5 : index
    %39 = memref.load %arg1[%38, %c5] : memref<6x8xi32, #tpu.memory_space<smem>>
    %c0_i32_25 = arith.constant 0 : i32
    %c63_i32_26 = arith.constant 63 : i32
    %40 = arith.maxsi %c0_i32_25, %39 : i32
    %41 = arith.minsi %c63_i32_26, %40 : i32
    %42 = arith.index_cast %41 : i32 to index
    %c0_27 = arith.constant 0 : index
    %43 = vector.load %arg4[%42, %c0_27] : memref<64x32xf32, #tpu.memory_space<vmem>>, vector<1x32xf32>
    %c5_28 = arith.constant 5 : index
    %c0_29 = arith.constant 0 : index
    %44 = vector.load %arg16[%c5_28, %c0_29] : memref<8x32xf32, #tpu.memory_space<vmem>>, vector<1x32xf32>
    tpu.vector_store %arg16[%c5_28, %c0_29], %43 {strides = array<i32>} : memref<8x32xf32, #tpu.memory_space<vmem>>, vector<1x32xf32>,
    %45 = arith.index_cast %arg0 : i32 to index
    %c6 = arith.constant 6 : index
    %46 = memref.load %arg1[%45, %c6] : memref<6x8xi32, #tpu.memory_space<smem>>
    %c0_i32_30 = arith.constant 0 : i32
    %c63_i32_31 = arith.constant 63 : i32
    %47 = arith.maxsi %c0_i32_30, %46 : i32
    %48 = arith.minsi %c63_i32_31, %47 : i32
    %49 = arith.index_cast %48 : i32 to index
    %c0_32 = arith.constant 0 : index
    %50 = vector.load %arg4[%49, %c0_32] : memref<64x32xf32, #tpu.memory_space<vmem>>, vector<1x32xf32>
    %c6_33 = arith.constant 6 : index
    %c0_34 = arith.constant 0 : index
    %51 = vector.load %arg16[%c6_33, %c0_34] : memref<8x32xf32, #tpu.memory_space<vmem>>, vector<1x32xf32>
    tpu.vector_store %arg16[%c6_33, %c0_34], %50 {strides = array<i32>} : memref<8x32xf32, #tpu.memory_space<vmem>>, vector<1x32xf32>,
    %52 = arith.index_cast %arg0 : i32 to index
    %c7 = arith.constant 7 : index
    %53 = memref.load %arg1[%52, %c7] : memref<6x8xi32, #tpu.memory_space<smem>>
    %c0_i32_35 = arith.constant 0 : i32
    %c63_i32_36 = arith.constant 63 : i32
    %54 = arith.maxsi %c0_i32_35, %53 : i32
    %55 = arith.minsi %c63_i32_36, %54 : i32
    %56 = arith.index_cast %55 : i32 to index
    %c0_37 = arith.constant 0 : index
    %57 = vector.load %arg4[%56, %c0_37] : memref<64x32xf32, #tpu.memory_space<vmem>>, vector<1x32xf32>
    %c7_38 = arith.constant 7 : index
    %c0_39 = arith.constant 0 : index
    %58 = vector.load %arg16[%c7_38, %c0_39] : memref<8x32xf32, #tpu.memory_space<vmem>>, vector<1x32xf32>
    tpu.vector_store %arg16[%c7_38, %c0_39], %57 {strides = array<i32>} : memref<8x32xf32, #tpu.memory_space<vmem>>, vector<1x32xf32>,
    %c0_40 = arith.constant 0 : index
    %c0_41 = arith.constant 0 : index
    %59 = vector.load %arg16[%c0_40, %c0_41] : memref<8x32xf32, #tpu.memory_space<vmem>>, vector<8x32xf32>
    %c0_42 = arith.constant 0 : index
    %c0_43 = arith.constant 0 : index
    %60 = vector.load %arg5[%c0_42, %c0_43] : memref<32x128xbf16, #tpu.memory_space<vmem>>, vector<32x128xbf16>
    %c0_44 = arith.constant 0 : index
    %c0_45 = arith.constant 0 : index
    %61 = vector.load %arg6[%c0_44, %c0_45] : memref<32x128xbf16, #tpu.memory_space<vmem>>, vector<32x128xbf16>
    %c0_46 = arith.constant 0 : index
    %c0_47 = arith.constant 0 : index
    %62 = vector.load %arg7[%c0_46, %c0_47] : memref<1x128xf32, #tpu.memory_space<vmem>>, vector<1x128xf32>
    %c0_48 = arith.constant 0 : index
    %c0_49 = arith.constant 0 : index
    %c0_50 = arith.constant 0 : index
    %63 = vector.load %arg17[%c0_48, %c0_49, %c0_50] : memref<2x8x32xf32, #tpu.memory_space<vmem>>, vector<1x8x32xf32>
    %64 = vector.shape_cast %63 : vector<1x8x32xf32> to vector<8x32xf32>
    %c0_51 = arith.constant 0 : index
    %c0_52 = arith.constant 0 : index
    %c0_53 = arith.constant 0 : index
    %65 = vector.load %arg18[%c0_51, %c0_52, %c0_53] : memref<2x8x32xf32, #tpu.memory_space<vmem>>, vector<1x8x32xf32>
    %66 = vector.shape_cast %65 : vector<1x8x32xf32> to vector<8x32xf32>
    %67 = arith.truncf %59 : vector<8x32xf32> to vector<8x32xbf16>
    %cst = arith.constant dense<0.000000e+00> : vector<8x128xf32>
    %68 = tpu.matmul %67, %60, %cst {dimension_numbers = #tpu.dot_dimension_numbers<[1], [0], [0], [1], [0, 0, 1, 1], [], []>} : vector<8x32xbf16>, vector<32x128xbf16>, vector<8x128xf32> -> vector<8x128xf32>
    %69 = arith.truncf %64 : vector<8x32xf32> to vector<8x32xbf16>
    %cst_54 = arith.constant dense<0.000000e+00> : vector<8x128xf32>
    %70 = tpu.matmul %69, %61, %cst_54 {dimension_numbers = #tpu.dot_dimension_numbers<[1], [0], [0], [1], [0, 0, 1, 1], [], []>} : vector<8x32xbf16>, vector<32x128xbf16>, vector<8x128xf32> -> vector<8x128xf32>
    %71 = arith.addf %68, %70 : vector<8x128xf32>
    %72 = vector.broadcast %62 : vector<1x128xf32> to vector<8x128xf32>
    %73 = arith.addf %71, %72 : vector<8x128xf32>
    %74 = arith.negf %73 : vector<8x128xf32>
    %75 = math.exp %74 : vector<8x128xf32>
    %cst_55 = arith.constant 1.000000e+00 : f32
    %76 = vector.broadcast %cst_55 : f32 to vector<8x128xf32>
    %77 = arith.addf %76, %75 : vector<8x128xf32>
    %78 = arith.divf %76, %77 : vector<8x128xf32>
    %79 = math.tanh %73 : vector<8x128xf32>
    %80 = vector.extract_strided_slice %78 {offsets = [0, 0], sizes = [8, 32], strides = [1, 1]} : vector<8x128xf32> to vector<8x32xf32>
    %81 = vector.extract_strided_slice %78 {offsets = [0, 32], sizes = [8, 32], strides = [1, 1]} : vector<8x128xf32> to vector<8x32xf32>
    %82 = vector.extract_strided_slice %79 {offsets = [0, 64], sizes = [8, 32], strides = [1, 1]} : vector<8x128xf32> to vector<8x32xf32>
    %83 = vector.extract_strided_slice %78 {offsets = [0, 96], sizes = [8, 32], strides = [1, 1]} : vector<8x128xf32> to vector<8x32xf32>
    %84 = arith.mulf %81, %66 : vector<8x32xf32>
    %85 = arith.mulf %80, %82 : vector<8x32xf32>
    %86 = arith.addf %84, %85 : vector<8x32xf32>
    %87 = math.tanh %86 : vector<8x32xf32>
    %88 = arith.mulf %83, %87 : vector<8x32xf32>
    %c0_56 = arith.constant 0 : index
    %c0_57 = arith.constant 0 : index
    %c0_58 = arith.constant 0 : index
    %89 = vector.load %arg17[%c0_56, %c0_57, %c0_58] : memref<2x8x32xf32, #tpu.memory_space<vmem>>, vector<1x8x32xf32>
    %90 = vector.shape_cast %89 : vector<1x8x32xf32> to vector<8x32xf32>
    %91 = vector.shape_cast %88 : vector<8x32xf32> to vector<1x8x32xf32>
    tpu.vector_store %arg17[%c0_56, %c0_57, %c0_58], %91 {strides = array<i32>} : memref<2x8x32xf32, #tpu.memory_space<vmem>>, vector<1x8x32xf32>,
    %c0_59 = arith.constant 0 : index
    %c0_60 = arith.constant 0 : index
    %c0_61 = arith.constant 0 : index
    %92 = vector.load %arg18[%c0_59, %c0_60, %c0_61] : memref<2x8x32xf32, #tpu.memory_space<vmem>>, vector<1x8x32xf32>
    %93 = vector.shape_cast %92 : vector<1x8x32xf32> to vector<8x32xf32>
    %94 = vector.shape_cast %86 : vector<8x32xf32> to vector<1x8x32xf32>
    tpu.vector_store %arg18[%c0_59, %c0_60, %c0_61], %94 {strides = array<i32>} : memref<2x8x32xf32, #tpu.memory_space<vmem>>, vector<1x8x32xf32>,
    %c0_62 = arith.constant 0 : index
    %c0_63 = arith.constant 0 : index
    %95 = vector.load %arg8[%c0_62, %c0_63] : memref<32x128xbf16, #tpu.memory_space<vmem>>, vector<32x128xbf16>
    %c0_64 = arith.constant 0 : index
    %c0_65 = arith.constant 0 : index
    %96 = vector.load %arg9[%c0_64, %c0_65] : memref<32x128xbf16, #tpu.memory_space<vmem>>, vector<32x128xbf16>
    %c0_66 = arith.constant 0 : index
    %c0_67 = arith.constant 0 : index
    %97 = vector.load %arg10[%c0_66, %c0_67] : memref<1x128xf32, #tpu.memory_space<vmem>>, vector<1x128xf32>
    %c1_68 = arith.constant 1 : index
    %c0_69 = arith.constant 0 : index
    %c0_70 = arith.constant 0 : index
    %98 = vector.load %arg17[%c1_68, %c0_69, %c0_70] : memref<2x8x32xf32, #tpu.memory_space<vmem>>, vector<1x8x32xf32>
    %99 = vector.shape_cast %98 : vector<1x8x32xf32> to vector<8x32xf32>
    %c1_71 = arith.constant 1 : index
    %c0_72 = arith.constant 0 : index
    %c0_73 = arith.constant 0 : index
    %100 = vector.load %arg18[%c1_71, %c0_72, %c0_73] : memref<2x8x32xf32, #tpu.memory_space<vmem>>, vector<1x8x32xf32>
    %101 = vector.shape_cast %100 : vector<1x8x32xf32> to vector<8x32xf32>
    %102 = arith.truncf %88 : vector<8x32xf32> to vector<8x32xbf16>
    %cst_74 = arith.constant dense<0.000000e+00> : vector<8x128xf32>
    %103 = tpu.matmul %102, %95, %cst_74 {dimension_numbers = #tpu.dot_dimension_numbers<[1], [0], [0], [1], [0, 0, 1, 1], [], []>} : vector<8x32xbf16>, vector<32x128xbf16>, vector<8x128xf32> -> vector<8x128xf32>
    %104 = arith.truncf %99 : vector<8x32xf32> to vector<8x32xbf16>
    %cst_75 = arith.constant dense<0.000000e+00> : vector<8x128xf32>
    %105 = tpu.matmul %104, %96, %cst_75 {dimension_numbers = #tpu.dot_dimension_numbers<[1], [0], [0], [1], [0, 0, 1, 1], [], []>} : vector<8x32xbf16>, vector<32x128xbf16>, vector<8x128xf32> -> vector<8x128xf32>
    %106 = arith.addf %103, %105 : vector<8x128xf32>
    %107 = vector.broadcast %97 : vector<1x128xf32> to vector<8x128xf32>
    %108 = arith.addf %106, %107 : vector<8x128xf32>
    %109 = arith.negf %108 : vector<8x128xf32>
    %110 = math.exp %109 : vector<8x128xf32>
    %cst_76 = arith.constant 1.000000e+00 : f32
    %111 = vector.broadcast %cst_76 : f32 to vector<8x128xf32>
    %112 = arith.addf %111, %110 : vector<8x128xf32>
    %113 = arith.divf %111, %112 : vector<8x128xf32>
    %114 = math.tanh %108 : vector<8x128xf32>
    %115 = vector.extract_strided_slice %113 {offsets = [0, 0], sizes = [8, 32], strides = [1, 1]} : vector<8x128xf32> to vector<8x32xf32>
    %116 = vector.extract_strided_slice %113 {offsets = [0, 32], sizes = [8, 32], strides = [1, 1]} : vector<8x128xf32> to vector<8x32xf32>
    %117 = vector.extract_strided_slice %114 {offsets = [0, 64], sizes = [8, 32], strides = [1, 1]} : vector<8x128xf32> to vector<8x32xf32>
    %118 = vector.extract_strided_slice %113 {offsets = [0, 96], sizes = [8, 32], strides = [1, 1]} : vector<8x128xf32> to vector<8x32xf32>
    %119 = arith.mulf %116, %101 : vector<8x32xf32>
    %120 = arith.mulf %115, %117 : vector<8x32xf32>
    %121 = arith.addf %119, %120 : vector<8x32xf32>
    %122 = math.tanh %121 : vector<8x32xf32>
    %123 = arith.mulf %118, %122 : vector<8x32xf32>
    %c1_77 = arith.constant 1 : index
    %c0_78 = arith.constant 0 : index
    %c0_79 = arith.constant 0 : index
    %124 = vector.load %arg17[%c1_77, %c0_78, %c0_79] : memref<2x8x32xf32, #tpu.memory_space<vmem>>, vector<1x8x32xf32>
    %125 = vector.shape_cast %124 : vector<1x8x32xf32> to vector<8x32xf32>
    %126 = vector.shape_cast %123 : vector<8x32xf32> to vector<1x8x32xf32>
    tpu.vector_store %arg17[%c1_77, %c0_78, %c0_79], %126 {strides = array<i32>} : memref<2x8x32xf32, #tpu.memory_space<vmem>>, vector<1x8x32xf32>,
    %c1_80 = arith.constant 1 : index
    %c0_81 = arith.constant 0 : index
    %c0_82 = arith.constant 0 : index
    %127 = vector.load %arg18[%c1_80, %c0_81, %c0_82] : memref<2x8x32xf32, #tpu.memory_space<vmem>>, vector<1x8x32xf32>
    %128 = vector.shape_cast %127 : vector<1x8x32xf32> to vector<8x32xf32>
    %129 = vector.shape_cast %121 : vector<8x32xf32> to vector<1x8x32xf32>
    tpu.vector_store %arg18[%c1_80, %c0_81, %c0_82], %129 {strides = array<i32>} : memref<2x8x32xf32, #tpu.memory_space<vmem>>, vector<1x8x32xf32>,
    %130 = arith.truncf %123 : vector<8x32xf32> to vector<8x32xbf16>
    %c0_83 = arith.constant 0 : index
    %c0_84 = arith.constant 0 : index
    %131 = vector.load %arg11[%c0_83, %c0_84] : memref<32x128xbf16, #tpu.memory_space<vmem>>, vector<32x128xbf16>
    %cst_85 = arith.constant dense<0.000000e+00> : vector<8x128xf32>
    %132 = tpu.matmul %130, %131, %cst_85 {dimension_numbers = #tpu.dot_dimension_numbers<[1], [0], [0], [1], [0, 0, 1, 1], [], []>} : vector<8x32xbf16>, vector<32x128xbf16>, vector<8x128xf32> -> vector<8x128xf32>
    %c0_86 = arith.constant 0 : index
    %c0_87 = arith.constant 0 : index
    %133 = vector.load %arg12[%c0_86, %c0_87] : memref<1x128xf32, #tpu.memory_space<vmem>>, vector<1x128xf32>
    %134 = vector.broadcast %133 : vector<1x128xf32> to vector<8x128xf32>
    %135 = arith.addf %132, %134 : vector<8x128xf32>
    %c0_88 = arith.constant 0 : index
    %c0_89 = arith.constant 0 : index
    %c0_90 = arith.constant 0 : index
    %136 = vector.load %arg13[%c0_88, %c0_89, %c0_90] : memref<1x8x128xf32, #tpu.memory_space<vmem>>, vector<1x8x128xf32>
    %137 = vector.shape_cast %136 : vector<1x8x128xf32> to vector<8x128xf32>
    %138 = vector.shape_cast %135 : vector<8x128xf32> to vector<1x8x128xf32>
    tpu.vector_store %arg13[%c0_88, %c0_89, %c0_90], %138 {strides = array<i32>} : memref<1x8x128xf32, #tpu.memory_space<vmem>>, vector<1x8x128xf32>,
    %c5_i32 = arith.constant 5 : i32
    %139 = arith.cmpi eq, %arg0, %c5_i32 : i32
    %140 = arith.extui %139 : i1 to i32
    %c0_i32_91 = arith.constant 0 : i32
    %141 = arith.cmpi ne, %140, %c0_i32_91 : i32
    scf.if %141 {
      %c0_92 = arith.constant 0 : index
      %c0_93 = arith.constant 0 : index
      %c0_94 = arith.constant 0 : index
      %142 = vector.load %arg17[%c0_92, %c0_93, %c0_94] : memref<2x8x32xf32, #tpu.memory_space<vmem>>, vector<2x8x32xf32>
      %c0_95 = arith.constant 0 : index
      %c0_96 = arith.constant 0 : index
      %c0_97 = arith.constant 0 : index
      %143 = vector.load %arg14[%c0_95, %c0_96, %c0_97] : memref<2x8x32xf32, #tpu.memory_space<vmem>>, vector<2x8x32xf32>
      tpu.vector_store %arg14[%c0_95, %c0_96, %c0_97], %142 {strides = array<i32>} : memref<2x8x32xf32, #tpu.memory_space<vmem>>, vector<2x8x32xf32>,
      %c0_98 = arith.constant 0 : index
      %c0_99 = arith.constant 0 : index
      %c0_100 = arith.constant 0 : index
      %144 = vector.load %arg18[%c0_98, %c0_99, %c0_100] : memref<2x8x32xf32, #tpu.memory_space<vmem>>, vector<2x8x32xf32>
      %c0_101 = arith.constant 0 : index
      %c0_102 = arith.constant 0 : index
      %c0_103 = arith.constant 0 : index
      %145 = vector.load %arg15[%c0_101, %c0_102, %c0_103] : memref<2x8x32xf32, #tpu.memory_space<vmem>>, vector<2x8x32xf32>
      tpu.vector_store %arg15[%c0_101, %c0_102, %c0_103], %144 {strides = array<i32>} : memref<2x8x32xf32, #tpu.memory_space<vmem>>, vector<2x8x32xf32>,
    } else {
    }
    return
  }
  func.func @transform_0(%arg0: i32, %arg1: memref<6x8xi32, #tpu.memory_space<smem>>) -> (i32, i32, i32) {
    %c0_i32 = arith.constant 0 : i32
    %c0_i32_0 = arith.constant 0 : i32
    %c0_i32_1 = arith.constant 0 : i32
    %c0_i32_2 = arith.constant 0 : i32
    return %c0_i32, %c0_i32_0, %c0_i32_1 : i32, i32, i32
  }
  func.func @transform_1(%arg0: i32, %arg1: memref<6x8xi32, #tpu.memory_space<smem>>) -> (i32, i32, i32) {
    %c0_i32 = arith.constant 0 : i32
    %c0_i32_0 = arith.constant 0 : i32
    %c0_i32_1 = arith.constant 0 : i32
    %c0_i32_2 = arith.constant 0 : i32
    return %c0_i32, %c0_i32_0, %c0_i32_1 : i32, i32, i32
  }
  func.func @transform_2(%arg0: i32, %arg1: memref<6x8xi32, #tpu.memory_space<smem>>) -> (i32, i32) {
    %c0_i32 = arith.constant 0 : i32
    %c0_i32_0 = arith.constant 0 : i32
    %c0_i32_1 = arith.constant 0 : i32
    return %c0_i32, %c0_i32_0 : i32, i32
  }
  func.func @transform_3(%arg0: i32, %arg1: memref<6x8xi32, #tpu.memory_space<smem>>) -> (i32, i32) {
    %c0_i32 = arith.constant 0 : i32
    %c0_i32_0 = arith.constant 0 : i32
    %c0_i32_1 = arith.constant 0 : i32
    return %c0_i32, %c0_i32_0 : i32, i32
  }
  func.func @transform_4(%arg0: i32, %arg1: memref<6x8xi32, #tpu.memory_space<smem>>) -> (i32, i32) {
    %c0_i32 = arith.constant 0 : i32
    %c0_i32_0 = arith.constant 0 : i32
    %c0_i32_1 = arith.constant 0 : i32
    return %c0_i32, %c0_i32_0 : i32, i32
  }
  func.func @transform_5(%arg0: i32, %arg1: memref<6x8xi32, #tpu.memory_space<smem>>) -> (i32, i32) {
    %c0_i32 = arith.constant 0 : i32
    %c0_i32_0 = arith.constant 0 : i32
    %c0_i32_1 = arith.constant 0 : i32
    return %c0_i32, %c0_i32_0 : i32, i32
  }
  func.func @transform_6(%arg0: i32, %arg1: memref<6x8xi32, #tpu.memory_space<smem>>) -> (i32, i32) {
    %c0_i32 = arith.constant 0 : i32
    %c0_i32_0 = arith.constant 0 : i32
    %c0_i32_1 = arith.constant 0 : i32
    return %c0_i32, %c0_i32_0 : i32, i32
  }
  func.func @transform_7(%arg0: i32, %arg1: memref<6x8xi32, #tpu.memory_space<smem>>) -> (i32, i32) {
    %c0_i32 = arith.constant 0 : i32
    %c0_i32_0 = arith.constant 0 : i32
    %c0_i32_1 = arith.constant 0 : i32
    return %c0_i32, %c0_i32_0 : i32, i32
  }
  func.func @transform_8(%arg0: i32, %arg1: memref<6x8xi32, #tpu.memory_space<smem>>) -> (i32, i32) {
    %c0_i32 = arith.constant 0 : i32
    %c0_i32_0 = arith.constant 0 : i32
    %c0_i32_1 = arith.constant 0 : i32
    return %c0_i32, %c0_i32_0 : i32, i32
  }
  func.func @transform_9(%arg0: i32, %arg1: memref<6x8xi32, #tpu.memory_space<smem>>) -> (i32, i32) {
    %c0_i32 = arith.constant 0 : i32
    %c0_i32_0 = arith.constant 0 : i32
    %c0_i32_1 = arith.constant 0 : i32
    return %c0_i32, %c0_i32_0 : i32, i32
  }
  func.func @transform_10(%arg0: i32, %arg1: memref<6x8xi32, #tpu.memory_space<smem>>) -> (i32, i32) {
    %c0_i32 = arith.constant 0 : i32
    %c0_i32_0 = arith.constant 0 : i32
    %c0_i32_1 = arith.constant 0 : i32
    return %c0_i32, %c0_i32_0 : i32, i32
  }
  func.func @transform_11(%arg0: i32, %arg1: memref<6x8xi32, #tpu.memory_space<smem>>) -> (i32, i32, i32) {
    %c0_i32 = arith.constant 0 : i32
    %c0_i32_0 = arith.constant 0 : i32
    %c0_i32_1 = arith.constant 0 : i32
    return %arg0, %c0_i32, %c0_i32_0 : i32, i32, i32
  }
  func.func @transform_12(%arg0: i32, %arg1: memref<6x8xi32, #tpu.memory_space<smem>>) -> (i32, i32, i32) {
    %c0_i32 = arith.constant 0 : i32
    %c0_i32_0 = arith.constant 0 : i32
    %c0_i32_1 = arith.constant 0 : i32
    %c0_i32_2 = arith.constant 0 : i32
    return %c0_i32, %c0_i32_0, %c0_i32_1 : i32, i32, i32
  }
  func.func @transform_13(%arg0: i32, %arg1: memref<6x8xi32, #tpu.memory_space<smem>>) -> (i32, i32, i32) {
    %c0_i32 = arith.constant 0 : i32
    %c0_i32_0 = arith.constant 0 : i32
    %c0_i32_1 = arith.constant 0 : i32
    %c0_i32_2 = arith.constant 0 : i32
    return %c0_i32, %c0_i32_0, %c0_i32_1 : i32, i32, i32
  }
}

</mosaic_0001>

<llo_original>
// kernel: _decode_impl.1
$region0: #{_decode_impl.1}
  #allocation0 [shape = 'u32[]', space=smem, size = 0x4, offset = 0x4, fixed_abs, tag = 'smem constant byte address 0x4 - core index']
  #allocation1 [shape = 'u32[144,128]{1,0:T(1,128)}', space=vmem, size = 0x12000, scoped, tag = 'internal scratch']
  #allocation2 [shape = 'f32[8,32]{1,0:T(8,128)}', space=vmem, size = 0x1000, scoped, tag = 'scratch operand']
  #allocation3 [shape = 'f32[2,8,32]{2,1,0:T(8,128)}', space=vmem, size = 0x2000, scoped, tag = 'scratch operand']
  #allocation4 [shape = 'f32[2,8,32]{2,1,0:T(8,128)}', space=vmem, size = 0x2000, scoped, tag = 'scratch operand']
  #allocation5 [shape = 's32[1]{0}', space=sflag, size = 0x4, scoped, tag = 'scoped memory for _decode_impl.1']
  #allocation6 [shape = 'u8[4096]{0}', space=smem, size = 0x1000, scoped, tag = 'prefetched SMEM operand 0']
  %s0 = inlined_call_operand.hbm [shape: s32[6,8], index: 0, kind: input, shape index: {}]
  %s1 = inlined_call_operand.vmem [shape: f32[2,8,32], index: 1, kind: input, shape index: {}]
  %s2 = inlined_call_operand.vmem [shape: f32[2,8,32], index: 2, kind: input, shape index: {}]
  %s3 = inlined_call_operand.vmem [shape: f32[64,32], index: 3, kind: input, shape index: {}]
  %s4 = inlined_call_operand.vmem [shape: bf16[32,128], index: 4, kind: input, shape index: {}]
  %s5 = inlined_call_operand.vmem [shape: bf16[32,128], index: 5, kind: input, shape index: {}]
  %s6 = inlined_call_operand.vmem [shape: f32[1,128], index: 6, kind: input, shape index: {}]
  %s7 = inlined_call_operand.vmem [shape: bf16[32,128], index: 7, kind: input, shape index: {}]
  %s8 = inlined_call_operand.vmem [shape: bf16[32,128], index: 8, kind: input, shape index: {}]
  %s9 = inlined_call_operand.vmem [shape: f32[1,128], index: 9, kind: input, shape index: {}]
  %s10 = inlined_call_operand.hbm [shape: bf16[32,128], index: 10, kind: input, shape index: {}]
  %s11 = inlined_call_operand.vmem [shape: f32[1,128], index: 11, kind: input, shape index: {}]
  %s12 = inlined_call_operand.hbm [shape: f32[6,8,128], index: 12, kind: output, shape index: {0}]
  %s13 = inlined_call_operand.hbm [shape: f32[2,8,32], index: 13, kind: output, shape index: {1}]
  %s14 = inlined_call_operand.hbm [shape: f32[2,8,32], index: 14, kind: output, shape index: {2}]
  %15 = xla_tuple %s12, %s13, %s14
  %s16 = sld [smem:[#allocation0]]
  $region105: #{_decode_impl.1} parent=0
    _
  %s18 = ssub.s32 1, %s16
  %s19 = scalar_select 0, %s18, %s16
  %21 = dma.hbm_to_smem %s0, 128, [#allocation6], [#allocation5]
  %22 = dma.done [#allocation5], 128
  %23 = sfence
  $region1: #{_decode_impl.1} parent=0
    #allocation7 [shape = 'u8[8192]{0}', space=vmem, size = 0x2000, scoped, tag = 'input window, operand 10, single buffered']
    #allocation8 [shape = 's32[2]{0}', space=sflag, size = 0x8, scoped, tag = 'scoped memory for _decode_impl.1']
    #allocation9 [shape = 's32[2]{0}', space=sflag, size = 0x8, scoped, tag = 'scoped memory for _decode_impl.1']
    #allocation10 [shape = 'u8[8192]{0}', space=vmem, size = 0x2000, scoped, tag = 'output window, operand 0']
    #allocation11 [shape = 'u8[8192]{0}', space=vmem, size = 0x2000, scoped, tag = 'output window, operand 1, single buffered']
    #allocation12 [shape = 's32[1]{0}', space=sflag, size = 0x4, scoped, tag = 'scoped memory for _decode_impl.1']
    #allocation13 [shape = 'u8[8192]{0}', space=vmem, size = 0x2000, scoped, tag = 'output window, operand 2, single buffered']
    %24 = vsyncpa [#allocation8], 0
    %25 = vsyncpa [#allocation9], 0
    %s26 = scalar_lea.sflag [#allocation9], 1
    %27 = vsyncpa %s26, 0
    %28 = vsyncpa [#allocation12], 0
    loop: start=0, step=1, limit=8
    $region2: #{_decode_impl.1} parent=1 // loop_pre_header
      _
    $region3: #{_decode_impl.1} parent=1 // loop_header
      %s30 = sphi 0, %s34
      %p31 = scmp.ge.s32.totalorder %s30, 8
      %s38 = sphi 0, %s38
      %s40 = sphi 0, %s38
      %s41 = sphi 0, %s40
      %s55 = sphi 0, %s41
      %s59 = sphi 0, %s59
      %s61 = sphi 0, %s59
      %s62 = sphi 0, %s61
      %s76 = sphi 0, %s62
      %s80 = sphi 0, %s80
      %s82 = sphi 0, %s80
      %s83 = sphi 0, %s82
      %s97 = sphi 0, %s83
      %s101 = sphi 0, %s101
      %s103 = sphi 0, %s101
      %s104 = sphi 0, %s103
      %s118 = sphi 0, %s104
      %s122 = sphi 0, %s122
      %s124 = sphi 0, %s122
      %s125 = sphi 0, %s124
      %s139 = sphi 0, %s125
      %s143 = sphi 0, %s143
      %s145 = sphi 0, %s143
      %s146 = sphi 0, %s145
      %s160 = sphi 0, %s146
      %s164 = sphi 0, %s164
      %s166 = sphi 0, %s164
      %s167 = sphi 0, %s166
      %s181 = sphi 0, %s167
      %s185 = sphi 0, %s185
      %s187 = sphi 0, %s185
      %s188 = sphi 0, %s187
      %s202 = sphi 0, %s188
      %s206 = sphi 0, %s206
      %s208 = sphi 0, %s206
      %s209 = sphi 0, %s208
      %s223 = sphi 0, %s209
      %s227 = sphi 0, %s227
      %s229 = sphi 0, %s227
      %s230 = sphi 0, %s229
      %s244 = sphi 0, %s230
      %s248 = sphi 0, %s248
      %s250 = sphi 0, %s248
      %s251 = sphi 0, %s250
      %s265 = sphi 0, %s251
      %s271 = sphi 0, %s273
      %s274 = sphi 0, %s271
      %s275 = sphi 0, %s274
      %s291 = sphi 0, %s275
      %s295 = sphi 0, %s295
      %s297 = sphi 0, %s295
      %s298 = sphi 0, %s297
      %s312 = sphi 0, %s298
      %s316 = sphi 0, %s316
      %s318 = sphi 0, %s316
      %s319 = sphi 0, %s318
      %s333 = sphi 0, %s319
    $region4: #{_decode_impl.1} parent=1 // loop_header_branch
      %33 = sbr.rel (%p31) target = $region8
    $region5: #{_decode_impl.1} parent=1 // loop_body
      %s35 = ssub.s32 %s30, 1
      %s36 = ssub.s32 %s30, 2
      %s37 = sadd.s32 %s30, 1
      %s39 = sadd.s32 %s38, 1
      %p42 = scmp.eq.s32.totalorder %s30, 5
      %p43 = scmp.ne.s32.totalorder %s38, %s40
      %p44 = scmp.eq.s32.totalorder %s30, 0
      %p45 = por %p43, %p44
      %p46 = scmp.ne.s32.totalorder %s38, %s40
      %p47 = scmp.eq.s32.totalorder %s35, 5
      %p48 = por %p46, %p47
      %p49 = scmp.ne.s32.totalorder %s40, %s41
      %p50 = scmp.eq.s32.totalorder %s35, 0
      %p51 = por %p49, %p50
      %p52 = scmp.ne.s32.totalorder %s40, %s41
      %p53 = scmp.eq.s32.totalorder %s36, 5
      %p54 = por %p52, %p53
      %p56 = scmp.ne.s32.totalorder %s41, %s55
      %p57 = scmp.eq.s32.totalorder %s36, 0
      %p58 = por %p56, %p57
      %s60 = sadd.s32 %s59, 1
      %p63 = scmp.eq.s32.totalorder %s30, 5
      %p64 = scmp.ne.s32.totalorder %s59, %s61
      %p65 = scmp.eq.s32.totalorder %s30, 0
      %p66 = por %p64, %p65
      %p67 = scmp.ne.s32.totalorder %s59, %s61
      %p68 = scmp.eq.s32.totalorder %s35, 5
      %p69 = por %p67, %p68
      %p70 = scmp.ne.s32.totalorder %s61, %s62
      %p71 = scmp.eq.s32.totalorder %s35, 0
      %p72 = por %p70, %p71
      %p73 = scmp.ne.s32.totalorder %s61, %s62
      %p74 = scmp.eq.s32.totalorder %s36, 5
      %p75 = por %p73, %p74
      %p77 = scmp.ne.s32.totalorder %s62, %s76
      %p78 = scmp.eq.s32.totalorder %s36, 0
      %p79 = por %p77, %p78
      %s81 = sadd.s32 %s80, 1
      %p84 = scmp.eq.s32.totalorder %s30, 5
      %p85 = scmp.ne.s32.totalorder %s80, %s82
      %p86 = scmp.eq.s32.totalorder %s30, 0
      %p87 = por %p85, %p86
      %p88 = scmp.ne.s32.totalorder %s80, %s82
      %p89 = scmp.eq.s32.totalorder %s35, 5
      %p90 = por %p88, %p89
      %p91 = scmp.ne.s32.totalorder %s82, %s83
      %p92 = scmp.eq.s32.totalorder %s35, 0
      %p93 = por %p91, %p92
      %p94 = scmp.ne.s32.totalorder %s82, %s83
      %p95 = scmp.eq.s32.totalorder %s36, 5
      %p96 = por %p94, %p95
      %p98 = scmp.ne.s32.totalorder %s83, %s97
      %p99 = scmp.eq.s32.totalorder %s36, 0
      %p100 = por %p98, %p99
      %s102 = sadd.s32 %s101, 1
      %p105 = scmp.eq.s32.totalorder %s30, 5
      %p106 = scmp.ne.s32.totalorder %s101, %s103
      %p107 = scmp.eq.s32.totalorder %s30, 0
      %p108 = por %p106, %p107
      %p109 = scmp.ne.s32.totalorder %s101, %s103
      %p110 = scmp.eq.s32.totalorder %s35, 5
      %p111 = por %p109, %p110
      %p112 = scmp.ne.s32.totalorder %s103, %s104
      %p113 = scmp.eq.s32.totalorder %s35, 0
      %p114 = por %p112, %p113
      %p115 = scmp.ne.s32.totalorder %s103, %s104
      %p116 = scmp.eq.s32.totalorder %s36, 5
      %p117 = por %p115, %p116
      %p119 = scmp.ne.s32.totalorder %s104, %s118
      %p120 = scmp.eq.s32.totalorder %s36, 0
      %p121 = por %p119, %p120
      %s123 = sadd.s32 %s122, 1
      %p126 = scmp.eq.s32.totalorder %s30, 5
      %p127 = scmp.ne.s32.totalorder %s122, %s124
      %p128 = scmp.eq.s32.totalorder %s30, 0
      %p129 = por %p127, %p128
      %p130 = scmp.ne.s32.totalorder %s122, %s124
      %p131 = scmp.eq.s32.totalorder %s35, 5
      %p132 = por %p130, %p131
      %p133 = scmp.ne.s32.totalorder %s124, %s125
      %p134 = scmp.eq.s32.totalorder %s35, 0
      %p135 = por %p133, %p134
      %p136 = scmp.ne.s32.totalorder %s124, %s125
      %p137 = scmp.eq.s32.totalorder %s36, 5
      %p138 = por %p136, %p137
      %p140 = scmp.ne.s32.totalorder %s125, %s139
      %p141 = scmp.eq.s32.totalorder %s36, 0
      %p142 = por %p140, %p141
      %s144 = sadd.s32 %s143, 1
      %p147 = scmp.eq.s32.totalorder %s30, 5
      %p148 = scmp.ne.s32.totalorder %s143, %s145
      %p149 = scmp.eq.s32.totalorder %s30, 0
      %p150 = por %p148, %p149
      %p151 = scmp.ne.s32.totalorder %s143, %s145
      %p152 = scmp.eq.s32.totalorder %s35, 5
      %p153 = por %p151, %p152
      %p154 = scmp.ne.s32.totalorder %s145, %s146
      %p155 = scmp.eq.s32.totalorder %s35, 0
      %p156 = por %p154, %p155
      %p157 = scmp.ne.s32.totalorder %s145, %s146
      %p158 = scmp.eq.s32.totalorder %s36, 5
      %p159 = por %p157, %p158
      %p161 = scmp.ne.s32.totalorder %s146, %s160
      %p162 = scmp.eq.s32.totalorder %s36, 0
      %p163 = por %p161, %p162
      %s165 = sadd.s32 %s164, 1
      %p168 = scmp.eq.s32.totalorder %s30, 5
      %p169 = scmp.ne.s32.totalorder %s164, %s166
      %p170 = scmp.eq.s32.totalorder %s30, 0
      %p171 = por %p169, %p170
      %p172 = scmp.ne.s32.totalorder %s164, %s166
      %p173 = scmp.eq.s32.totalorder %s35, 5
      %p174 = por %p172, %p173
      %p175 = scmp.ne.s32.totalorder %s166, %s167
      %p176 = scmp.eq.s32.totalorder %s35, 0
      %p177 = por %p175, %p176
      %p178 = scmp.ne.s32.totalorder %s166, %s167
      %p179 = scmp.eq.s32.totalorder %s36, 5
      %p180 = por %p178, %p179
      %p182 = scmp.ne.s32.totalorder %s167, %s181
      %p183 = scmp.eq.s32.totalorder %s36, 0
      %p184 = por %p182, %p183
      %s186 = sadd.s32 %s185, 1
      %p189 = scmp.eq.s32.totalorder %s30, 5
      %p190 = scmp.ne.s32.totalorder %s185, %s187
      %p191 = scmp.eq.s32.totalorder %s30, 0
      %p192 = por %p190, %p191
      %p193 = scmp.ne.s32.totalorder %s185, %s187
      %p194 = scmp.eq.s32.totalorder %s35, 5
      %p195 = por %p193, %p194
      %p196 = scmp.ne.s32.totalorder %s187, %s188
      %p197 = scmp.eq.s32.totalorder %s35, 0
      %p198 = por %p196, %p197
      %p199 = scmp.ne.s32.totalorder %s187, %s188
      %p200 = scmp.eq.s32.totalorder %s36, 5
      %p201 = por %p199, %p200
      %p203 = scmp.ne.s32.totalorder %s188, %s202
      %p204 = scmp.eq.s32.totalorder %s36, 0
      %p205 = por %p203, %p204
      %s207 = sadd.s32 %s206, 1
      %p210 = scmp.eq.s32.totalorder %s30, 5
      %p211 = scmp.ne.s32.totalorder %s206, %s208
      %p212 = scmp.eq.s32.totalorder %s30, 0
      %p213 = por %p211, %p212
      %p214 = scmp.ne.s32.totalorder %s206, %s208
      %p215 = scmp.eq.s32.totalorder %s35, 5
      %p216 = por %p214, %p215
      %p217 = scmp.ne.s32.totalorder %s208, %s209
      %p218 = scmp.eq.s32.totalorder %s35, 0
      %p219 = por %p217, %p218
      %p220 = scmp.ne.s32.totalorder %s208, %s209
      %p221 = scmp.eq.s32.totalorder %s36, 5
      %p222 = por %p220, %p221
      %p224 = scmp.ne.s32.totalorder %s209, %s223
      %p225 = scmp.eq.s32.totalorder %s36, 0
      %p226 = por %p224, %p225
      %s228 = sadd.s32 %s227, 1
      %p231 = scmp.eq.s32.totalorder %s30, 5
      %p232 = scmp.ne.s32.totalorder %s227, %s229
      %p233 = scmp.eq.s32.totalorder %s30, 0
      %p234 = por %p232, %p233
      %p235 = scmp.ne.s32.totalorder %s227, %s229
      %p236 = scmp.eq.s32.totalorder %s35, 5
      %p237 = por %p235, %p236
      %p238 = scmp.ne.s32.totalorder %s229, %s230
      %p239 = scmp.eq.s32.totalorder %s35, 0
      %p240 = por %p238, %p239
      %p241 = scmp.ne.s32.totalorder %s229, %s230
      %p242 = scmp.eq.s32.totalorder %s36, 5
      %p243 = por %p241, %p242
      %p245 = scmp.ne.s32.totalorder %s230, %s244
      %p246 = scmp.eq.s32.totalorder %s36, 0
      %p247 = por %p245, %p246
      %s249 = sadd.s32 %s248, 1
      %p252 = scmp.eq.s32.totalorder %s30, 5
      %p253 = scmp.ne.s32.totalorder %s248, %s250
      %p254 = scmp.eq.s32.totalorder %s30, 0
      %p255 = por %p253, %p254
      %p256 = scmp.ne.s32.totalorder %s248, %s250
      %p257 = scmp.eq.s32.totalorder %s35, 5
      %p258 = por %p256, %p257
      %p259 = scmp.ne.s32.totalorder %s250, %s251
      %p260 = scmp.eq.s32.totalorder %s35, 0
      %p261 = por %p259, %p260
      %p262 = scmp.ne.s32.totalorder %s250, %s251
      %p263 = scmp.eq.s32.totalorder %s36, 5
      %p264 = por %p262, %p263
      %p266 = scmp.ne.s32.totalorder %s251, %s265
      %p267 = scmp.eq.s32.totalorder %s36, 0
      %p268 = por %p266, %p267
      %s269 = ssub.s32 %s30, %s37
      %p270 = scmp.eq.s32.totalorder %s269, 0
      %s272 = sadd.s32 %s271, 1
      %s273 = scalar_select %p270, %s271, %s272
      %p276 = pneg %p270
      %p277 = scmp.eq.s32.totalorder %s30, 5
      %p278 = por %p276, %p277
      %p279 = scmp.ne.s32.totalorder %s271, %s274
      %p280 = scmp.eq.s32.totalorder %s30, 0
      %p281 = por %p279, %p280
      %p282 = scmp.ne.s32.totalorder %s271, %s274
      %p283 = scmp.eq.s32.totalorder %s35, 5
      %p284 = por %p282, %p283
      %p285 = scmp.ne.s32.totalorder %s274, %s275
      %p286 = scmp.eq.s32.totalorder %s35, 0
      %p287 = por %p285, %p286
      %p288 = scmp.ne.s32.totalorder %s274, %s275
      %p289 = scmp.eq.s32.totalorder %s36, 5
      %p290 = por %p288, %p289
      %p292 = scmp.ne.s32.totalorder %s275, %s291
      %p293 = scmp.eq.s32.totalorder %s36, 0
      %p294 = por %p292, %p293
      %s296 = sadd.s32 %s295, 1
      %p299 = scmp.eq.s32.totalorder %s30, 5
      %p300 = scmp.ne.s32.totalorder %s295, %s297
      %p301 = scmp.eq.s32.totalorder %s30, 0
      %p302 = por %p300, %p301
      %p303 = scmp.ne.s32.totalorder %s295, %s297
      %p304 = scmp.eq.s32.totalorder %s35, 5
      %p305 = por %p303, %p304
      %p306 = scmp.ne.s32.totalorder %s297, %s298
      %p307 = scmp.eq.s32.totalorder %s35, 0
      %p308 = por %p306, %p307
      %p309 = scmp.ne.s32.totalorder %s297, %s298
      %p310 = scmp.eq.s32.totalorder %s36, 5
      %p311 = por %p309, %p310
      %p313 = scmp.ne.s32.totalorder %s298, %s312
      %p314 = scmp.eq.s32.totalorder %s36, 0
      %p315 = por %p313, %p314
      %s317 = sadd.s32 %s316, 1
      %p320 = scmp.eq.s32.totalorder %s30, 5
      %p321 = scmp.ne.s32.totalorder %s316, %s318
      %p322 = scmp.eq.s32.totalorder %s30, 0
      %p323 = por %p321, %p322
      %p324 = scmp.ne.s32.totalorder %s316, %s318
      %p325 = scmp.eq.s32.totalorder %s35, 5
      %p326 = por %p324, %p325
      %p327 = scmp.ne.s32.totalorder %s318, %s319
      %p328 = scmp.eq.s32.totalorder %s35, 0
      %p329 = por %p327, %p328
      %p330 = scmp.ne.s32.totalorder %s318, %s319
      %p331 = scmp.eq.s32.totalorder %s36, 5
      %p332 = por %p330, %p331
      %p334 = scmp.ne.s32.totalorder %s319, %s333
      %p335 = scmp.eq.s32.totalorder %s36, 0
      %p336 = por %p334, %p335
      %p337 = scmp.le.s32.totalorder 1, %s30
      %p338 = scmp.lt.s32.totalorder %s30, 7
      %p339 = pnand %p337, %p338
      %p340 = pneg %p339
      // Predicated region
      $region9: #{_decode_impl.1} parent=5 // pred_check
        _
      $region10: #{_decode_impl.1} parent=5 // pred_check_branch
        %342 = sbr.rel (%p339) target = $region12
      $region11: #{_decode_impl.1} parent=5 // pred_region
        %s343 = ssub.s32 %s30, 1
        // Predicated region
        $region13: #{_decode_impl.1} parent=11 // pred_check
          %p344 = pneg %p51
        $region14: #{_decode_impl.1} parent=11 // pred_check_branch
          %346 = sbr.rel (%p344) target = $region16
        $region15: #{_decode_impl.1} parent=11 // pred_region
          _
        $region16: #{_decode_impl.1} parent=11 // pred_fallthru
          _
        // Predicated region
        $region17: #{_decode_impl.1} parent=11 // pred_check
          %p347 = pneg %p72
        $region18: #{_decode_impl.1} parent=11 // pred_check_branch
          %349 = sbr.rel (%p347) target = $region20
        $region19: #{_decode_impl.1} parent=11 // pred_region
          _
        $region20: #{_decode_impl.1} parent=11 // pred_fallthru
          _
        // Predicated region
        $region21: #{_decode_impl.1} parent=11 // pred_check
          %p350 = pneg %p93
        $region22: #{_decode_impl.1} parent=11 // pred_check_branch
          %352 = sbr.rel (%p350) target = $region24
        $region23: #{_decode_impl.1} parent=11 // pred_region
          _
        $region24: #{_decode_impl.1} parent=11 // pred_fallthru
          _
        // Predicated region
        $region25: #{_decode_impl.1} parent=11 // pred_check
          %p353 = pneg %p114
        $region26: #{_decode_impl.1} parent=11 // pred_check_branch
          %355 = sbr.rel (%p353) target = $region28
        $region27: #{_decode_impl.1} parent=11 // pred_region
          _
        $region28: #{_decode_impl.1} parent=11 // pred_fallthru
          _
        // Predicated region
        $region29: #{_decode_impl.1} parent=11 // pred_check
          %p356 = pneg %p135
        $region30: #{_decode_impl.1} parent=11 // pred_check_branch
          %358 = sbr.rel (%p356) target = $region32
        $region31: #{_decode_impl.1} parent=11 // pred_region
          _
        $region32: #{_decode_impl.1} parent=11 // pred_fallthru
          _
        // Predicated region
        $region33: #{_decode_impl.1} parent=11 // pred_check
          %p359 = pneg %p156
        $region34: #{_decode_impl.1} parent=11 // pred_check_branch
          %361 = sbr.rel (%p359) target = $region36
        $region35: #{_decode_impl.1} parent=11 // pred_region
          _
        $region36: #{_decode_impl.1} parent=11 // pred_fallthru
          _
        // Predicated region
        $region37: #{_decode_impl.1} parent=11 // pred_check
          %p362 = pneg %p177
        $region38: #{_decode_impl.1} parent=11 // pred_check_branch
          %364 = sbr.rel (%p362) target = $region40
        $region39: #{_decode_impl.1} parent=11 // pred_region
          _
        $region40: #{_decode_impl.1} parent=11 // pred_fallthru
          _
        // Predicated region
        $region41: #{_decode_impl.1} parent=11 // pred_check
          %p365 = pneg %p198
        $region42: #{_decode_impl.1} parent=11 // pred_check_branch
          %367 = sbr.rel (%p365) target = $region44
        $region43: #{_decode_impl.1} parent=11 // pred_region
          _
        $region44: #{_decode_impl.1} parent=11 // pred_fallthru
          _
        // Predicated region
        $region45: #{_decode_impl.1} parent=11 // pred_check
          %p368 = pneg %p219
        $region46: #{_decode_impl.1} parent=11 // pred_check_branch
          %370 = sbr.rel (%p368) target = $region48
        $region47: #{_decode_impl.1} parent=11 // pred_region
          _
        $region48: #{_decode_impl.1} parent=11 // pred_fallthru
          _
        // Predicated region
        $region49: #{_decode_impl.1} parent=11 // pred_check
          %p371 = pneg %p240
        $region50: #{_decode_impl.1} parent=11 // pred_check_branch
          %373 = sbr.rel (%p371) target = $region52
        $region51: #{_decode_impl.1} parent=11 // pred_region
          %s375 = ssub.s32 256, 256
          %376 = vsyncadd [#allocation8], %s375
          %s377 = sshll.u32 [#allocation7], 4
          %s378 = int_to_ptr.vmem [resolvable:$true] %s377
          %383 = dma.hbm_to_vmem [thread:$0]  %s10, 256, %s378, [#allocation8], 64, 64, 4
        $region52: #{_decode_impl.1} parent=11 // pred_fallthru
          _
        // Predicated region
        $region53: #{_decode_impl.1} parent=11 // pred_check
          %p384 = pneg %p261
        $region54: #{_decode_impl.1} parent=11 // pred_check_branch
          %386 = sbr.rel (%p384) target = $region56
        $region55: #{_decode_impl.1} parent=11 // pred_region
          _
        $region56: #{_decode_impl.1} parent=11 // pred_fallthru
          _
      $region12: #{_decode_impl.1} parent=5 // pred_fallthru
        _
      %p387 = scmp.lt.s32.totalorder %s30, 6
      // Predicated region
      $region57: #{_decode_impl.1} parent=5 // pred_check
        %p388 = pneg %p387
      $region58: #{_decode_impl.1} parent=5 // pred_check_branch
        %390 = sbr.rel (%p388) target = $region60
      $region59: #{_decode_impl.1} parent=5 // pred_region
        _
      $region60: #{_decode_impl.1} parent=5 // pred_fallthru
        _
      %p391 = scmp.le.s32.totalorder 1, %s30
      %p392 = scmp.lt.s32.totalorder %s30, 7
      %p393 = pnand %p391, %p392
      %p394 = pneg %p393
      // Predicated region
      $region61: #{_decode_impl.1} parent=5 // pred_check
        _
      $region62: #{_decode_impl.1} parent=5 // pred_check_branch
        %396 = sbr.rel (%p393) target = $region64
      $region63: #{_decode_impl.1} parent=5 // pred_region
        %s397 = ssub.s32 %s30, 1
        // Predicated region
        $region65: #{_decode_impl.1} parent=63 // pred_check
          %p398 = pneg %p240
        $region66: #{_decode_impl.1} parent=63 // pred_check_branch
          %400 = sbr.rel (%p398) target = $region68
        $region67: #{_decode_impl.1} parent=63 // pred_region
          %401 = dma.done [#allocation8], 256
        $region68: #{_decode_impl.1} parent=63 // pred_fallthru
          _
        %p402 = pneg %p51
        %p403 = pneg %p48
        %p404 = pneg %p72
        %p405 = pneg %p69
        %p406 = pneg %p93
        %p407 = pneg %p90
        %p408 = pneg %p114
        %p409 = pneg %p111
        %p410 = pneg %p135
        %p411 = pneg %p132
        %p412 = pneg %p156
        %p413 = pneg %p153
        %p414 = pneg %p177
        %p415 = pneg %p174
        %p416 = pneg %p198
        %p417 = pneg %p195
        %p418 = pneg %p219
        %p419 = pneg %p216
        %p420 = pneg %p240
        %p421 = pneg %p237
        %p422 = pneg %p261
        %p423 = pneg %p258
        %p424 = pneg %p287
        %p425 = pneg %p284
        %s426 = sand.u32 %s274, 1
        %s427 = scalar_lea.sflag [#allocation9], %s426
        %s428 = sand.u32 %s274, 1
        %s429 = smul.addr %s428, 8
        %s430 = scalar_lea.vmem [#allocation10], %s429
        %p431 = pneg %p308
        %p432 = pneg %p305
        %p433 = pneg %p329
        %p434 = pneg %p326
        %p436 = scmp.eq.s32.totalorder %s35, 0
        // Predicated region
        $region69: #{_decode_impl.1} parent=63 // pred_check
          %p437 = pneg %p436
        $region70: #{_decode_impl.1} parent=63 // pred_check_branch
          %439 = sbr.rel (%p437) target = $region72
        $region71: #{_decode_impl.1} parent=63 // pred_region
          %v440 = vld [vmem:[%s1] sm:$0xff]
          %v441 = vld [vmem:[%s1 + $0x8] sm:$0xff]
          %vm442 = vcmask 261120
          %443 = vst.msk [vmem:[#allocation3] sm:$0xff] %vm442, %v440
          %444 = vst.msk [vmem:[#allocation3 + $0x8] sm:$0xff] %vm442, %v441
          %v445 = vld [vmem:[%s2] sm:$0xff]
          %v446 = vld [vmem:[%s2 + $0x8] sm:$0xff]
          %447 = vst.msk [vmem:[#allocation4] sm:$0xff] %vm442, %v445
          %448 = vst.msk [vmem:[#allocation4 + $0x8] sm:$0xff] %vm442, %v446
        $region72: #{_decode_impl.1} parent=63 // pred_fallthru
          _
        %s449 = smul.u32 %s35, 128
        %s450 = sld [smem:[#allocation6 + %s449]]
        %p451 = scmp.gt.s32.totalorder %s450, 0
        %s452 = scalar_select %p451, %s450, 0
        %p453 = scmp.lt.s32.totalorder %s452, 63
        %s454 = scalar_select %p453, %s452, 63
        %s455 = scalar_lea.vmem %s3, %s454
        %v456 = vld [vmem:[%s455] sm:$0x1]
        %vm457 = vcmask 253952
        %458 = vst.msk [vmem:[#allocation2] sm:$0x1] %vm457, %v456
        %s459 = sadd.s32 %s449, 1
        %s460 = sld [smem:[#allocation6 + %s459]]
        %p461 = scmp.gt.s32.totalorder %s460, 0
        %s462 = scalar_select %p461, %s460, 0
        %p463 = scmp.lt.s32.totalorder %s462, 63
        %s464 = scalar_select %p463, %s462, 63
        %s465 = scalar_lea.vmem %s3, %s464
        %v466 = vld [vmem:[%s465] sm:$0x1]
        %467 = vst.msk [vmem:[#allocation2 + $0x1] sm:$0x1] %vm457, %v466
        %s468 = sadd.s32 %s449, 2
        %s469 = sld [smem:[#allocation6 + %s468]]
        %p470 = scmp.gt.s32.totalorder %s469, 0
        %s471 = scalar_select %p470, %s469, 0
        %p472 = scmp.lt.s32.totalorder %s471, 63
        %s473 = scalar_select %p472, %s471, 63
        %s474 = scalar_lea.vmem %s3, %s473
        %v475 = vld [vmem:[%s474] sm:$0x1]
        %476 = vst.msk [vmem:[#allocation2 + $0x2] sm:$0x1] %vm457, %v475
        %s477 = sadd.s32 %s449, 3
        %s478 = sld [smem:[#allocation6 + %s477]]
        %p479 = scmp.gt.s32.totalorder %s478, 0
        %s480 = scalar_select %p479, %s478, 0
        %p481 = scmp.lt.s32.totalorder %s480, 63
        %s482 = scalar_select %p481, %s480, 63
        %s483 = scalar_lea.vmem %s3, %s482
        %v484 = vld [vmem:[%s483] sm:$0x1]
        %485 = vst.msk [vmem:[#allocation2 + $0x3] sm:$0x1] %vm457, %v484
        %s486 = sadd.s32 %s449, 4
        %s487 = sld [smem:[#allocation6 + %s486]]
        %p488 = scmp.gt.s32.totalorder %s487, 0
        %s489 = scalar_select %p488, %s487, 0
        %p490 = scmp.lt.s32.totalorder %s489, 63
        %s491 = scalar_select %p490, %s489, 63
        %s492 = scalar_lea.vmem %s3, %s491
        %v493 = vld [vmem:[%s492] sm:$0x1]
        %494 = vst.msk [vmem:[#allocation2 + $0x4] sm:$0x1] %vm457, %v493
        %s495 = sadd.s32 %s449, 5
        %s496 = sld [smem:[#allocation6 + %s495]]
        %p497 = scmp.gt.s32.totalorder %s496, 0
        %s498 = scalar_select %p497, %s496, 0
        %p499 = scmp.lt.s32.totalorder %s498, 63
        %s500 = scalar_select %p499, %s498, 63
        %s501 = scalar_lea.vmem %s3, %s500
        %v502 = vld [vmem:[%s501] sm:$0x1]
        %503 = vst.msk [vmem:[#allocation2 + $0x5] sm:$0x1] %vm457, %v502
        %s504 = sadd.s32 %s449, 6
        %s505 = sld [smem:[#allocation6 + %s504]]
        %p506 = scmp.gt.s32.totalorder %s505, 0
        %s507 = scalar_select %p506, %s505, 0
        %p508 = scmp.lt.s32.totalorder %s507, 63
        %s509 = scalar_select %p508, %s507, 63
        %s510 = scalar_lea.vmem %s3, %s509
        %v511 = vld [vmem:[%s510] sm:$0x1]
        %512 = vst.msk [vmem:[#allocation2 + $0x6] sm:$0x1] %vm457, %v511
        %s513 = sadd.s32 %s449, 7
        %s514 = sld [smem:[#allocation6 + %s513]]
        %p515 = scmp.gt.s32.totalorder %s514, 0
        %s516 = scalar_select %p515, %s514, 0
        %p517 = scmp.lt.s32.totalorder %s516, 63
        %s518 = scalar_select %p517, %s516, 63
        %s519 = scalar_lea.vmem %s3, %s518
        %v520 = vld [vmem:[%s519] sm:$0x1]
        %521 = vst.msk [vmem:[#allocation2 + $0x7] sm:$0x1] %vm457, %v520
        %v522 = vld [vmem:[#allocation2] sm:$0xff]
        %v523 = vld [vmem:[%s4] sm:$0xf]
        %v524 = vld [vmem:[%s4 + $0x4] sm:$0xf]
        %v525 = vld [vmem:[%s4 + $0x8] sm:$0xf]
        %v526 = vld [vmem:[%s4 + $0xc] sm:$0xf]
        %v527 = vld [vmem:[%s5] sm:$0xf]
        %v528 = vld [vmem:[%s5 + $0x4] sm:$0xf]
        %v529 = vld [vmem:[%s5 + $0x8] sm:$0xf]
        %v530 = vld [vmem:[%s5 + $0xc] sm:$0xf]
        %v531 = vld [vmem:[%s6] sm:$0x1]
        %v532 = vld [vmem:[#allocation3] sm:$0xff]
        %v533 = vld [vmem:[#allocation4] sm:$0xff]
        %v534 = vpack.c.bf16 %v522, %v522
        %v535 = vpack.c.bf16 %v532, %v532
        %v540 = vunpack.c.l.b16 %v527
        %v541 = vunpack.c.l.b16 %v528
        %v542 = vunpack.c.l.b16 %v529
        %v543 = vunpack.c.l.b16 %v530
        %v544 = vpack.c.b16 %v541, %v540
        %v545 = vpack.c.b16 %v543, %v542
        %vm548 = vcmask 261120
        %v550 = vsel %vm548, %v535, 0
        %552 = vmatprep.subr.bf16.mxu0 0
        %553 = vmatpush1.bf16.msra.mxu0 0
        %554 = vmatprep.subr.bf16.mxu0 0
        %555 = vmatpush1.bf16.msra.mxu0 0
        %556 = vmatprep.subr.bf16.mxu0 0
        %557 = vmatpush1.bf16.msra.mxu0 0
        %558 = vmatprep.subr.bf16.mxu0 0
        %559 = vmatpush1.bf16.msra.mxu0 0
        %560 = vmatprep.subr.bf16.mxu0 0
        %561 = vmatpush1.bf16.msra.mxu0 0
        %562 = vmatprep.subr.bf16.mxu0 0
        %563 = vmatpush1.bf16.msra.mxu0 0
        %564 = vmatprep.subr.bf16.mxu0 0
        %565 = vmatpush1.bf16.msra.mxu0 %v545
        %566 = vmatprep.subr.bf16.mxu0 0
        %567 = vmatpush1.bf16.msra.mxu0 %v544
        %568 = vmatprep.subr.bf16.mxu0 0
        %569 = vmatpush2.bf16.msra.mxu0 0
        %570 = vmatprep.subr.bf16.mxu0 0
        %571 = vmatpush2.bf16.msra.mxu0 0
        %572 = vmatprep.subr.bf16.mxu0 0
        %573 = vmatpush2.bf16.msra.mxu0 0
        %574 = vmatprep.subr.bf16.mxu0 0
        %575 = vmatpush2.bf16.msra.mxu0 0
        %576 = vmatprep.subr.bf16.mxu0 0
        %577 = vmatpush2.bf16.msra.mxu0 0
        %578 = vmatprep.subr.bf16.mxu0 0
        %579 = vmatpush2.bf16.msra.mxu0 0
        %580 = vmatprep.subr.bf16.mxu0 0
        %581 = vmatpush2.bf16.msra.mxu0 0
        %582 = vmatprep.subr.bf16.mxu0 0
        %583 = vmatpush2.bf16.msra.mxu0 0
        %584 = vmatprep.mubr.bf16.mxu0 0
        %585 = vmatmul.mubr.bf16.gmra.mxu0 %v550
        %v586 = vpop.f32.mrf.mxu0
        %v587 = vadd.f32 0.0, %v586
        %v588 = vpop.f32.mrf.mxu0
        %v589 = vpop.f32.mrf.mxu0
        %v590 = vpop.f32.mrf.mxu0
        %591 = vdwg.mxu0
        %v596 = vunpack.c.l.b16 %v523
        %v597 = vunpack.c.l.b16 %v524
        %v598 = vunpack.c.l.b16 %v525
        %v599 = vunpack.c.l.b16 %v526
        %v600 = vpack.c.b16 %v597, %v596
        %v601 = vpack.c.b16 %v599, %v598
        %v605 = vsel %vm548, %v534, 0
        %607 = vmatprep.subr.bf16.mxu0 0
        %608 = vmatpush1.bf16.msra.mxu0 0
        %609 = vmatprep.subr.bf16.mxu0 0
        %610 = vmatpush1.bf16.msra.mxu0 0
        %611 = vmatprep.subr.bf16.mxu0 0
        %612 = vmatpush1.bf16.msra.mxu0 0
        %613 = vmatprep.subr.bf16.mxu0 0
        %614 = vmatpush1.bf16.msra.mxu0 0
        %615 = vmatprep.subr.bf16.mxu0 0
        %616 = vmatpush1.bf16.msra.mxu0 0
        %617 = vmatprep.subr.bf16.mxu0 0
        %618 = vmatpush1.bf16.msra.mxu0 0
        %619 = vmatprep.subr.bf16.mxu0 0
        %620 = vmatpush1.bf16.msra.mxu0 %v601
        %621 = vmatprep.subr.bf16.mxu0 0
        %622 = vmatpush1.bf16.msra.mxu0 %v600
        %623 = vmatprep.subr.bf16.mxu0 0
        %624 = vmatpush2.bf16.msra.mxu0 0
        %625 = vmatprep.subr.bf16.mxu0 0
        %626 = vmatpush2.bf16.msra.mxu0 0
        %627 = vmatprep.subr.bf16.mxu0 0
        %628 = vmatpush2.bf16.msra.mxu0 0
        %629 = vmatprep.subr.bf16.mxu0 0
        %630 = vmatpush2.bf16.msra.mxu0 0
        %631 = vmatprep.subr.bf16.mxu0 0
        %632 = vmatpush2.bf16.msra.mxu0 0
        %633 = vmatprep.subr.bf16.mxu0 0
        %634 = vmatpush2.bf16.msra.mxu0 0
        %635 = vmatprep.subr.bf16.mxu0 0
        %636 = vmatpush2.bf16.msra.mxu0 0
        %637 = vmatprep.subr.bf16.mxu0 0
        %638 = vmatpush2.bf16.msra.mxu0 0
        %639 = vmatprep.mubr.bf16.mxu0 0
        %640 = vmatmul.mubr.bf16.gmra.mxu0 %v605
        %v641 = vpop.f32.mrf.mxu0
        %v642 = vadd.f32 %v587, %v641
        %v643 = vpop.f32.mrf.mxu0
        %v644 = vpop.f32.mrf.mxu0
        %v645 = vpop.f32.mrf.mxu0
        %646 = vdwg.mxu0
        %v648 = vlaneseq
        %v649 = vshrl.u32 %v648, 7
        %v650 = vsub.s32 0, %v649
        %v651 = vrot.slane %v531, %v650
        %v653 = vadd.f32 %v642, %v651
        %v654 = vxor.u32 %v653, 2147483648
        %v655 = vmul.f32 %v654, 1.442695
        %v656 = vpow.pop %v655
        %v657 = vadd.f32 %v656, 1.0
        %v658 = vrcp.pop %v657
        %v659 = vmul.f32 1.0, %v658
        %v660 = vtanh.pop %v653
        %662 = vrot.lane.b32.xlu0 %v533, 32
        %v663 = vpop.permute.xlu0 %662
        %v665 = vmul.f32 %v659, %v663
        %667 = vrot.lane.b32.xlu0 %v660, 64
        %v668 = vpop.permute.xlu0 %667
        %v670 = vmul.f32 %v659, %v668
        %672 = vrot.lane.b32.xlu0 %v670, 32
        %v673 = vpop.permute.xlu0 %672
        %v675 = vadd.f32 %v665, %v673
        %v676 = vtanh.pop %v675
        %678 = vrot.lane.b32.xlu0 %v676, 64
        %v679 = vpop.permute.xlu0 %678
        %v681 = vmul.f32 %v659, %v679
        %683 = vrot.lane.b32.xlu0 %v681, 32
        %v684 = vpop.permute.xlu0 %683
        %686 = vst.msk [vmem:[#allocation3] sm:$0xff] %vm548, %v684
        %688 = vrot.lane.b32.xlu0 %v675, 96
        %v689 = vpop.permute.xlu0 %688
        %691 = vst.msk [vmem:[#allocation4] sm:$0xff] %vm548, %v689
        %v692 = vld [vmem:[%s7] sm:$0xf]
        %v693 = vld [vmem:[%s7 + $0x4] sm:$0xf]
        %v694 = vld [vmem:[%s7 + $0x8] sm:$0xf]
        %v695 = vld [vmem:[%s7 + $0xc] sm:$0xf]
        %v696 = vld [vmem:[%s8] sm:$0xf]
        %v697 = vld [vmem:[%s8 + $0x4] sm:$0xf]
        %v698 = vld [vmem:[%s8 + $0x8] sm:$0xf]
        %v699 = vld [vmem:[%s8 + $0xc] sm:$0xf]
        %v700 = vld [vmem:[%s9] sm:$0x1]
        %s701 = scalar_lea.vmem [#allocation3], 8
        %v702 = vld [vmem:[%s701] sm:$0xff]
        %s703 = scalar_lea.vmem [#allocation4], 8
        %v704 = vld [vmem:[%s703] sm:$0xff]
        %v705 = vpack.c.bf16 %v681, %v681
        %v706 = vpack.c.bf16 %v702, %v702
        %v711 = vunpack.c.l.b16 %v696
        %v712 = vunpack.c.l.b16 %v697
        %v713 = vunpack.c.l.b16 %v698
        %v714 = vunpack.c.l.b16 %v699
        %v715 = vpack.c.b16 %v712, %v711
        %v716 = vpack.c.b16 %v714, %v713
        %v720 = vsel %vm548, %v706, 0
        %722 = vmatprep.subr.bf16.mxu0 0
        %723 = vmatpush1.bf16.msra.mxu0 0
        %724 = vmatprep.subr.bf16.mxu0 0
        %725 = vmatpush1.bf16.msra.mxu0 0
        %726 = vmatprep.subr.bf16.mxu0 0
        %727 = vmatpush1.bf16.msra.mxu0 0
        %728 = vmatprep.subr.bf16.mxu0 0
        %729 = vmatpush1.bf16.msra.mxu0 0
        %730 = vmatprep.subr.bf16.mxu0 0
        %731 = vmatpush1.bf16.msra.mxu0 0
        %732 = vmatprep.subr.bf16.mxu0 0
        %733 = vmatpush1.bf16.msra.mxu0 0
        %734 = vmatprep.subr.bf16.mxu0 0
        %735 = vmatpush1.bf16.msra.mxu0 %v716
        %736 = vmatprep.subr.bf16.mxu0 0
        %737 = vmatpush1.bf16.msra.mxu0 %v715
        %738 = vmatprep.subr.bf16.mxu0 0
        %739 = vmatpush2.bf16.msra.mxu0 0
        %740 = vmatprep.subr.bf16.mxu0 0
        %741 = vmatpush2.bf16.msra.mxu0 0
        %742 = vmatprep.subr.bf16.mxu0 0
        %743 = vmatpush2.bf16.msra.mxu0 0
        %744 = vmatprep.subr.bf16.mxu0 0
        %745 = vmatpush2.bf16.msra.mxu0 0
        %746 = vmatprep.subr.bf16.mxu0 0
        %747 = vmatpush2.bf16.msra.mxu0 0
        %748 = vmatprep.subr.bf16.mxu0 0
        %749 = vmatpush2.bf16.msra.mxu0 0
        %750 = vmatprep.subr.bf16.mxu0 0
        %751 = vmatpush2.bf16.msra.mxu0 0
        %752 = vmatprep.subr.bf16.mxu0 0
        %753 = vmatpush2.bf16.msra.mxu0 0
        %754 = vmatprep.mubr.bf16.mxu0 0
        %755 = vmatmul.mubr.bf16.gmra.mxu0 %v720
        %v756 = vpop.f32.mrf.mxu0
        %v757 = vadd.f32 0.0, %v756
        %v758 = vpop.f32.mrf.mxu0
        %v759 = vpop.f32.mrf.mxu0
        %v760 = vpop.f32.mrf.mxu0
        %761 = vdwg.mxu0
        %763 = vrot.lane.b32.xlu0 %v705, 32
        %v764 = vpop.permute.xlu0 %763
        %v769 = vunpack.c.l.b16 %v692
        %v770 = vunpack.c.l.b16 %v693
        %v771 = vunpack.c.l.b16 %v694
        %v772 = vunpack.c.l.b16 %v695
        %v773 = vpack.c.b16 %v770, %v769
        %v774 = vpack.c.b16 %v772, %v771
        %v778 = vsel %vm548, %v764, 0
        %780 = vmatprep.subr.bf16.mxu0 0
        %781 = vmatpush1.bf16.msra.mxu0 0
        %782 = vmatprep.subr.bf16.mxu0 0
        %783 = vmatpush1.bf16.msra.mxu0 0
        %784 = vmatprep.subr.bf16.mxu0 0
        %785 = vmatpush1.bf16.msra.mxu0 0
        %786 = vmatprep.subr.bf16.mxu0 0
        %787 = vmatpush1.bf16.msra.mxu0 0
        %788 = vmatprep.subr.bf16.mxu0 0
        %789 = vmatpush1.bf16.msra.mxu0 0
        %790 = vmatprep.subr.bf16.mxu0 0
        %791 = vmatpush1.bf16.msra.mxu0 0
        %792 = vmatprep.subr.bf16.mxu0 0
        %793 = vmatpush1.bf16.msra.mxu0 %v774
        %794 = vmatprep.subr.bf16.mxu0 0
        %795 = vmatpush1.bf16.msra.mxu0 %v773
        %796 = vmatprep.subr.bf16.mxu0 0
        %797 = vmatpush2.bf16.msra.mxu0 0
        %798 = vmatprep.subr.bf16.mxu0 0
        %799 = vmatpush2.bf16.msra.mxu0 0
        %800 = vmatprep.subr.bf16.mxu0 0
        %801 = vmatpush2.bf16.msra.mxu0 0
        %802 = vmatprep.subr.bf16.mxu0 0
        %803 = vmatpush2.bf16.msra.mxu0 0
        %804 = vmatprep.subr.bf16.mxu0 0
        %805 = vmatpush2.bf16.msra.mxu0 0
        %806 = vmatprep.subr.bf16.mxu0 0
        %807 = vmatpush2.bf16.msra.mxu0 0
        %808 = vmatprep.subr.bf16.mxu0 0
        %809 = vmatpush2.bf16.msra.mxu0 0
        %810 = vmatprep.subr.bf16.mxu0 0
        %811 = vmatpush2.bf16.msra.mxu0 0
        %812 = vmatprep.mubr.bf16.mxu0 0
        %813 = vmatmul.mubr.bf16.gmra.mxu0 %v778
        %v814 = vpop.f32.mrf.mxu0
        %v815 = vadd.f32 %v757, %v814
        %v816 = vpop.f32.mrf.mxu0
        %v817 = vpop.f32.mrf.mxu0
        %v818 = vpop.f32.mrf.mxu0
        %819 = vdwg.mxu0
        %v821 = vlaneseq
        %v822 = vshrl.u32 %v821, 7
        %v823 = vsub.s32 0, %v822
        %v824 = vrot.slane %v700, %v823
        %v826 = vadd.f32 %v815, %v824
        %v827 = vxor.u32 %v826, 2147483648
        %v828 = vmul.f32 %v827, 1.442695
        %v829 = vpow.pop %v828
        %v830 = vadd.f32 %v829, 1.0
        %v831 = vrcp.pop %v830
        %v832 = vmul.f32 1.0, %v831
        %v833 = vtanh.pop %v826
        %835 = vrot.lane.b32.xlu0 %v704, 32
        %v836 = vpop.permute.xlu0 %835
        %v838 = vmul.f32 %v832, %v836
        %840 = vrot.lane.b32.xlu0 %v833, 64
        %v841 = vpop.permute.xlu0 %840
        %v843 = vmul.f32 %v832, %v841
        %845 = vrot.lane.b32.xlu0 %v843, 32
        %v846 = vpop.permute.xlu0 %845
        %v848 = vadd.f32 %v838, %v846
        %v849 = vtanh.pop %v848
        %851 = vrot.lane.b32.xlu0 %v849, 64
        %v852 = vpop.permute.xlu0 %851
        %v854 = vmul.f32 %v832, %v852
        %856 = vrot.lane.b32.xlu0 %v854, 32
        %v857 = vpop.permute.xlu0 %856
        %859 = vst.msk [vmem:[%s701] sm:$0xff] %vm548, %v857
        %861 = vrot.lane.b32.xlu0 %v848, 96
        %v862 = vpop.permute.xlu0 %861
        %864 = vst.msk [vmem:[%s703] sm:$0xff] %vm548, %v862
        %v865 = vpack.c.bf16 %v854, %v854
        %v866 = vld [vmem:[#allocation7] sm:$0xf]
        %v867 = vld [vmem:[#allocation7 + $0x4] sm:$0xf]
        %v868 = vld [vmem:[#allocation7 + $0x8] sm:$0xf]
        %v869 = vld [vmem:[#allocation7 + $0xc] sm:$0xf]
        %v870 = vld [vmem:[%s11] sm:$0x1]
        %v872 = vlaneseq
        %v873 = vshrl.u32 %v872, 7
        %v874 = vsub.s32 0, %v873
        %v875 = vrot.slane %v870, %v874
        %878 = vrot.lane.b32.xlu0 %v865, 32
        %v879 = vpop.permute.xlu0 %878
        %v884 = vunpack.c.l.b16 %v866
        %v885 = vunpack.c.l.b16 %v867
        %v886 = vunpack.c.l.b16 %v868
        %v887 = vunpack.c.l.b16 %v869
        %v888 = vpack.c.b16 %v885, %v884
        %v889 = vpack.c.b16 %v887, %v886
        %v893 = vsel %vm548, %v879, 0
        %895 = vmatprep.subr.bf16.mxu0 0
        %896 = vmatpush1.bf16.msra.mxu0 0
        %897 = vmatprep.subr.bf16.mxu0 0
        %898 = vmatpush1.bf16.msra.mxu0 0
        %899 = vmatprep.subr.bf16.mxu0 0
        %900 = vmatpush1.bf16.msra.mxu0 0
        %901 = vmatprep.subr.bf16.mxu0 0
        %902 = vmatpush1.bf16.msra.mxu0 0
        %903 = vmatprep.subr.bf16.mxu0 0
        %904 = vmatpush1.bf16.msra.mxu0 0
        %905 = vmatprep.subr.bf16.mxu0 0
        %906 = vmatpush1.bf16.msra.mxu0 0
        %907 = vmatprep.subr.bf16.mxu0 0
        %908 = vmatpush1.bf16.msra.mxu0 %v889
        %909 = vmatprep.subr.bf16.mxu0 0
        %910 = vmatpush1.bf16.msra.mxu0 %v888
        %911 = vmatprep.subr.bf16.mxu0 0
        %912 = vmatpush2.bf16.msra.mxu0 0
        %913 = vmatprep.subr.bf16.mxu0 0
        %914 = vmatpush2.bf16.msra.mxu0 0
        %915 = vmatprep.subr.bf16.mxu0 0
        %916 = vmatpush2.bf16.msra.mxu0 0
        %917 = vmatprep.subr.bf16.mxu0 0
        %918 = vmatpush2.bf16.msra.mxu0 0
        %919 = vmatprep.subr.bf16.mxu0 0
        %920 = vmatpush2.bf16.msra.mxu0 0
        %921 = vmatprep.subr.bf16.mxu0 0
        %922 = vmatpush2.bf16.msra.mxu0 0
        %923 = vmatprep.subr.bf16.mxu0 0
        %924 = vmatpush2.bf16.msra.mxu0 0
        %925 = vmatprep.subr.bf16.mxu0 0
        %926 = vmatpush2.bf16.msra.mxu0 0
        %927 = vmatprep.mubr.bf16.mxu0 0
        %928 = vmatmul.mubr.bf16.gmra.mxu0 %v893
        %v929 = vpop.f32.mrf.mxu0
        %v930 = vadd.f32 %v875, %v929
        %v931 = vpop.f32.mrf.mxu0
        %v932 = vpop.f32.mrf.mxu0
        %v933 = vpop.f32.mrf.mxu0
        %934 = vdwg.mxu0
        %935 = vst [vmem:[%s430] sm:$0xff] %v930
        %p936 = scmp.eq.s32.totalorder %s35, 5
        // Predicated region
        $region73: #{_decode_impl.1} parent=63 // pred_check
          %p937 = pneg %p936
        $region74: #{_decode_impl.1} parent=63 // pred_check_branch
          %939 = sbr.rel (%p937) target = $region76
        $region75: #{_decode_impl.1} parent=63 // pred_region
          %v940 = vld [vmem:[#allocation3] sm:$0xff]
          %v941 = vld [vmem:[#allocation3 + $0x8] sm:$0xff]
          %942 = vst.msk [vmem:[#allocation11] sm:$0xff] %vm548, %v940
          %943 = vst.msk [vmem:[#allocation11 + $0x8] sm:$0xff] %vm548, %v941
          %v944 = vld [vmem:[#allocation4] sm:$0xff]
          %v945 = vld [vmem:[#allocation4 + $0x8] sm:$0xff]
          %946 = vst.msk [vmem:[#allocation13] sm:$0xff] %vm548, %v944
          %947 = vst.msk [vmem:[#allocation13 + $0x8] sm:$0xff] %vm548, %v945
        $region76: #{_decode_impl.1} parent=63 // pred_fallthru
          _
        %s948 = sand.u32 %s274, 1
        %s949 = scalar_lea.sflag [#allocation9], %s948
        %s950 = sand.u32 %s274, 1
        %s951 = smul.addr %s950, 8
        %s952 = scalar_lea.vmem [#allocation10], %s951
        // Predicated region
        $region77: #{_decode_impl.1} parent=63 // pred_check
          %p953 = pneg %p284
        $region78: #{_decode_impl.1} parent=63 // pred_check_branch
          %955 = sbr.rel (%p953) target = $region80
        $region79: #{_decode_impl.1} parent=63 // pred_region
          %s957 = ssub.s32 128, 128
          %958 = vsyncadd %s949, %s957
          %s959 = smul.addr %s35, 128
          %s960 = scalar_lea.hbm %s12, %s959
          %s962 = sshll.u32 %s952, 4
          %s963 = int_to_ptr.vmem [resolvable:$true] %s962
          %965 = dma.vmem_to_hbm [thread:$0]  %s963, 128, %s960, %s949
        $region80: #{_decode_impl.1} parent=63 // pred_fallthru
          _
        // Predicated region
        $region81: #{_decode_impl.1} parent=63 // pred_check
          %p966 = pneg %p305
        $region82: #{_decode_impl.1} parent=63 // pred_check_branch
          %968 = sbr.rel (%p966) target = $region84
        $region83: #{_decode_impl.1} parent=63 // pred_region
          %s970 = ssub.s32 256, 256
          %971 = vsyncadd [#allocation12], %s970
          %s972 = sshll.u32 [#allocation11], 4
          %s973 = int_to_ptr.vmem [resolvable:$true] %s972
          %978 = dma.vmem_to_hbm [thread:$0]  %s973, 256, %s13, [#allocation12], 128, 128, 8
        $region84: #{_decode_impl.1} parent=63 // pred_fallthru
          _
        // Predicated region
        $region85: #{_decode_impl.1} parent=63 // pred_check
          %p979 = pneg %p326
        $region86: #{_decode_impl.1} parent=63 // pred_check_branch
          %981 = sbr.rel (%p979) target = $region88
        $region87: #{_decode_impl.1} parent=63 // pred_region
          %s983 = ssub.s32 256, 256
          %984 = vsyncadd [#allocation12], %s983
          %s985 = sshll.u32 [#allocation13], 4
          %s986 = int_to_ptr.vmem [resolvable:$true] %s985
          %991 = dma.vmem_to_hbm [thread:$0]  %s986, 256, %s14, [#allocation12], 128, 128, 8
        $region88: #{_decode_impl.1} parent=63 // pred_fallthru
          _
        // Predicated region
        $region89: #{_decode_impl.1} parent=63 // pred_check
          %p992 = pneg %p305
        $region90: #{_decode_impl.1} parent=63 // pred_check_branch
          %994 = sbr.rel (%p992) target = $region92
        $region91: #{_decode_impl.1} parent=63 // pred_region
          %995 = dma.done [#allocation12], 256
        $region92: #{_decode_impl.1} parent=63 // pred_fallthru
          _
        // Predicated region
        $region93: #{_decode_impl.1} parent=63 // pred_check
          %p996 = pneg %p326
        $region94: #{_decode_impl.1} parent=63 // pred_check_branch
          %998 = sbr.rel (%p996) target = $region96
        $region95: #{_decode_impl.1} parent=63 // pred_region
          %999 = dma.done [#allocation12], 256
        $region96: #{_decode_impl.1} parent=63 // pred_fallthru
          _
      $region64: #{_decode_impl.1} parent=5 // pred_fallthru
        _
      %p1000 = scmp.le.s32.totalorder 2, %s30
      // Predicated region
      $region97: #{_decode_impl.1} parent=5 // pred_check
        %p1001 = pneg %p1000
      $region98: #{_decode_impl.1} parent=5 // pred_check_branch
        %1003 = sbr.rel (%p1001) target = $region100
      $region99: #{_decode_impl.1} parent=5 // pred_region
        %s1004 = ssub.s32 %s30, 2
        // Predicated region
        $region101: #{_decode_impl.1} parent=99 // pred_check
          %p1005 = pneg %p290
        $region102: #{_decode_impl.1} parent=99 // pred_check_branch
          %1007 = sbr.rel (%p1005) target = $region104
        $region103: #{_decode_impl.1} parent=99 // pred_region
          %s1008 = sand.u32 %s275, 1
          %s1009 = scalar_lea.sflag [#allocation9], %s1008
          %s1010 = sand.u32 %s275, 1
          %s1011 = smul.addr %s1010, 8
          %s1012 = scalar_lea.vmem [#allocation10], %s1011
          %1013 = dma.done %s1009, 128
        $region104: #{_decode_impl.1} parent=99 // pred_fallthru
          _
      $region100: #{_decode_impl.1} parent=5 // pred_fallthru
        _
    $region6: #{_decode_impl.1} parent=1 // loop_footer
      %s34 = sadd.s32 1, %s30
    $region7: #{_decode_impl.1} parent=1 // loop_footer_branch
      %29 = sbr.rel target = $region3
    $region8: #{_decode_impl.1} parent=1 // loop_exit
      _
    %1014 = vsyncpa [#allocation8], 1
    %s1015 = scalar_lea.sflag [#allocation8], 1
    %1016 = vsyncpa %s1015, 1
    %1017 = vsyncpa [#allocation9], 1
    %s1018 = scalar_lea.sflag [#allocation9], 1
    %1019 = vsyncpa %s1018, 1
    %1020 = vsyncpa [#allocation12], 1

</llo_original>
